<compile_context>
chip_gen: v7x
topology: tpu7x:2x2x1
jax: 0.10.0
libtpu: 0.0.40
codegen_flags: <defaults>
</compile_context>

<pallas_src>
import functools
import math

import jax
import jax.numpy as jnp
from jax.experimental import pallas as pl
from jax.experimental.pallas import tpu as pltpu

LN_EPS = 1e-5            # nn.LayerNorm default
MASK_FILL = -1e6         # d2l.masked_softmax fill value


# ----------------------------------------------------------------------------
# Tiling / VMEM helpers
# ----------------------------------------------------------------------------

_PIPELINE_BUDGET = 24 * 1024 * 1024   # f32 pipeline-buffer budget (fits v7x)


def _round_up(x, m):
    return ((x + m - 1) // m) * m


def _pick_row_tile(rows, width):
    """Bounded, 8-aligned row tile (f32 sublane multiple).

    Keeps ~6 double-buffered tiles of `width` columns inside the pipeline
    budget and guarantees >= 2 grid steps whenever possible so the row axis
    can be sharded across v7x's two TensorCores."""
    cap = _PIPELINE_BUDGET // (6 * width * 4)
    cap = max(8, (cap // 8) * 8)
    tile = min(1024, cap)
    if rows >= 16:
        half = max(8, (pl.cdiv(rows, 2) // 8) * 8)
        tile = min(tile, half)
    tile = min(tile, max(8, _round_up(rows, 8)))
    return int(tile)


def _vmem_limit_bytes(*f32_elems_per_step):
    """Explicit VMEM budget: double-buffered pipeline blocks + headroom for
    in-kernel f32 temporaries, capped well under v7x's 64 MiB physical VMEM."""
    pipeline = 2 * sum(int(e) for e in f32_elems_per_step) * 4
    limit = pipeline + (8 << 20)
    return int(min(max(limit, 16 << 20), 48 << 20))


# ----------------------------------------------------------------------------
# AddNorm: LayerNorm(dropout(Y) + X), dropout == identity in eval mode
# ----------------------------------------------------------------------------

def addnorm_kernel(x_ref, y_ref, gamma_ref, beta_ref, o_ref):
    # TODO(synk): train-mode dropout would need pltpu.prng_seed/prng_random_bits.
    z = y_ref[...].astype(jnp.float32) + x_ref[...].astype(jnp.float32)
    mean = jnp.mean(z, axis=-1, keepdims=True)
    centered = z - mean
    var = jnp.mean(centered * centered, axis=-1, keepdims=True)
    inv = jax.lax.rsqrt(var + LN_EPS)
    o_ref[...] = (centered * inv * gamma_ref[...] + beta_ref[...]).astype(o_ref.dtype)


def addnorm(x, y, gamma, beta, row_tile=None):
    """LayerNorm(y + x) over the last axis. x, y: (..., H); gamma, beta: (H,)."""
    orig_shape = x.shape
    hidden = orig_shape[-1]
    x2 = x.reshape(-1, hidden)
    y2 = y.reshape(-1, hidden)
    rows = x2.shape[0]
    if row_tile is None:
        row_tile = _pick_row_tile(rows, hidden)
    padded = pl.cdiv(rows, row_tile) * row_tile
    if padded != rows:                         # keep every tile full / unmasked
        x2 = jnp.pad(x2, ((0, padded - rows), (0, 0)))
        y2 = jnp.pad(y2, ((0, padded - rows), (0, 0)))
    gamma2 = gamma.astype(jnp.float32).reshape(1, hidden)   # pre-cast once
    beta2 = beta.astype(jnp.float32).reshape(1, hidden)

    out = pl.pallas_call(
        addnorm_kernel,
        out_shape=jax.ShapeDtypeStruct((padded, hidden), x.dtype),
        grid_spec=pltpu.PrefetchScalarGridSpec(
            num_scalar_prefetch=0,
            grid=(padded // row_tile,),
            in_specs=[
                pl.BlockSpec((row_tile, hidden), lambda i: (i, 0)),
                pl.BlockSpec((row_tile, hidden), lambda i: (i, 0)),
                pl.BlockSpec((1, hidden), lambda i: (0, 0)),
                pl.BlockSpec((1, hidden), lambda i: (0, 0)),
            ],
            out_specs=pl.BlockSpec((row_tile, hidden), lambda i: (i, 0)),
        ),
        compiler_params=pltpu.CompilerParams(
            dimension_semantics=("parallel",),
            vmem_limit_bytes=_vmem_limit_bytes(
                3 * row_tile * hidden + 2 * hidden),
        ),
    )(x2, y2, gamma2, beta2)

    if padded != rows:
        out = out[:rows]
    return out.reshape(orig_shape)


# ----------------------------------------------------------------------------
# Linear projection: x @ W + b
# ----------------------------------------------------------------------------

def linear_kernel(x_ref, w_ref, b_ref, o_ref):
    acc = jnp.dot(x_ref[...], w_ref[...], preferred_element_type=jnp.float32)
    o_ref[...] = (acc + b_ref[...]).astype(o_ref.dtype)


def linear(x, w, b, row_tile=None):
    """x: (rows, in_f), w: (in_f, out_f), b: (out_f,) -> (rows, out_f).
    TODO(synk): add K/N tiling for very wide layers; demo widths fit in VMEM."""
    rows, in_f = x.shape
    out_f = w.shape[1]
    if row_tile is None:
        row_tile = _pick_row_tile(rows, max(in_f, out_f))
    padded = pl.cdiv(rows, row_tile) * row_tile
    if padded != rows:
        x = jnp.pad(x, ((0, padded - rows), (0, 0)))
    b2 = b.astype(jnp.float32).reshape(1, out_f)

    out = pl.pallas_call(
        linear_kernel,
        out_shape=jax.ShapeDtypeStruct((padded, out_f), x.dtype),
        grid_spec=pltpu.PrefetchScalarGridSpec(
            num_scalar_prefetch=0,
            grid=(padded // row_tile,),
            in_specs=[
                pl.BlockSpec((row_tile, in_f), lambda i: (i, 0)),
                pl.BlockSpec((in_f, out_f), lambda i: (0, 0)),
                pl.BlockSpec((1, out_f), lambda i: (0, 0)),
            ],
            out_specs=pl.BlockSpec((row_tile, out_f), lambda i: (i, 0)),
        ),
        compiler_params=pltpu.CompilerParams(
            dimension_semantics=("parallel",),
            vmem_limit_bytes=_vmem_limit_bytes(
                row_tile * (in_f + out_f), in_f * out_f + out_f),
        ),
    )(x, w, b2)

    return out[:rows] if padded != rows else out


# ----------------------------------------------------------------------------
# Fused PositionWiseFFN: relu(x @ w1 + b1) @ w2 + b2
# ----------------------------------------------------------------------------

def ffn_kernel(x_ref, w1_ref, b1_ref, w2_ref, b2_ref, o_ref):
    h = jnp.dot(x_ref[...], w1_ref[...], preferred_element_type=jnp.float32)
    h = jnp.maximum(h + b1_ref[...], 0.0)
    o = jnp.dot(h, w2_ref[...], preferred_element_type=jnp.float32) + b2_ref[...]
    o_ref[...] = o.astype(o_ref.dtype)


def ffn(x, w1, b1, w2, b2, row_tile=None):
    orig_shape = x.shape
    in_f = orig_shape[-1]
    hid = w1.shape[1]
    out_f = w2.shape[1]
    x2 = x.reshape(-1, in_f)
    rows = x2.shape[0]
    if row_tile is None:
        row_tile = _pick_row_tile(rows, max(in_f, hid, out_f))
    padded = pl.cdiv(rows, row_tile) * row_tile
    if padded != rows:
        x2 = jnp.pad(x2, ((0, padded - rows), (0, 0)))

    out = pl.pallas_call(
        ffn_kernel,
        out_shape=jax.ShapeDtypeStruct((padded, out_f), x.dtype),
        grid_spec=pltpu.PrefetchScalarGridSpec(
            num_scalar_prefetch=0,
            grid=(padded // row_tile,),
            in_specs=[
                pl.BlockSpec((row_tile, in_f), lambda i: (i, 0)),
                pl.BlockSpec((in_f, hid), lambda i: (0, 0)),
                pl.BlockSpec((1, hid), lambda i: (0, 0)),
                pl.BlockSpec((hid, out_f), lambda i: (0, 0)),
                pl.BlockSpec((1, out_f), lambda i: (0, 0)),
            ],
            out_specs=pl.BlockSpec((row_tile, out_f), lambda i: (i, 0)),
        ),
        compiler_params=pltpu.CompilerParams(
            dimension_semantics=("parallel",),
            vmem_limit_bytes=_vmem_limit_bytes(
                row_tile * (in_f + hid + out_f),
                in_f * hid + hid * out_f + hid + out_f),
        ),
    )(x2,
      w1.astype(jnp.float32), b1.astype(jnp.float32).reshape(1, hid),
      w2.astype(jnp.float32), b2.astype(jnp.float32).reshape(1, out_f))

    if padded != rows:
        out = out[:rows]
    return out.reshape(orig_shape[:-1] + (out_f,))


# ----------------------------------------------------------------------------
# Scaled dot-product attention with d2l-style masked softmax
# ----------------------------------------------------------------------------

def attention_kernel(vlen_ref, q_ref, k_ref, v_ref, o_ref, *, scale):
    bh = pl.program_id(0)
    q = q_ref[0].astype(jnp.float32)               # (Sq, dh)
    k = k_ref[0].astype(jnp.float32)               # (Sk, dh)
    v = v_ref[0].astype(jnp.float32)               # (Sk, dh)
    scores = jax.lax.dot_general(
        q, k, (((1,), (1,)), ((), ())),
        preferred_element_type=jnp.float32) * scale           # (Sq, Sk)
    vlen = vlen_ref[bh]
    col = jax.lax.broadcasted_iota(jnp.int32, scores.shape, 1)
    scores = jnp.where(col < vlen, scores, MASK_FILL)          # d2l masked_softmax
    m = jnp.max(scores, axis=-1, keepdims=True)
    p = jnp.exp(scores - m)
    attn = p / jnp.sum(p, axis=-1, keepdims=True)
    out = jnp.dot(attn, v, preferred_element_type=jnp.float32)
    o_ref[0] = out.astype(o_ref.dtype)


def scaled_dot_attention(q, k, v, valid_lens):
    """q: (BH, Sq, dh), k, v: (BH, Sk, dh), valid_lens: (BH,) int32."""
    BH, Sq, dh = q.shape
    Sk = k.shape[1]
    kern = functools.partial(attention_kernel, scale=1.0 / math.sqrt(dh))
    return pl.pallas_call(
        kern,
        out_shape=jax.ShapeDtypeStruct((BH, Sq, dh), q.dtype),
        grid_spec=pltpu.PrefetchScalarGridSpec(
            num_scalar_prefetch=1,                  # valid_lens -> SMEM
            grid=(BH,),
            in_specs=[
                pl.BlockSpec((1, Sq, dh), lambda b, vl: (b, 0, 0)),
                pl.BlockSpec((1, Sk, dh), lambda b, vl: (b, 0, 0)),
                pl.BlockSpec((1, Sk, dh), lambda b, vl: (b, 0, 0)),
            ],
            out_specs=pl.BlockSpec((1, Sq, dh), lambda b, vl: (b, 0, 0)),
        ),
        compiler_params=pltpu.CompilerParams(
            dimension_semantics=("parallel",),
            vmem_limit_bytes=_vmem_limit_bytes(
                2 * Sq * dh + 2 * Sk * dh + Sq * Sk),
        ),
    )(valid_lens.astype(jnp.int32), q, k, v)


# ----------------------------------------------------------------------------
# Multi-head attention + DecoderBlock forward (eval mode)
# ----------------------------------------------------------------------------

def _split_heads(x, num_heads):
    b, s, h = x.shape
    x = x.reshape(b, s, num_heads, h // num_heads)
    x = jnp.transpose(x, (0, 2, 1, 3))
    return x.reshape(b * num_heads, s, h // num_heads)


def _merge_heads(x, num_heads):
    bh, s, dh = x.shape
    b = bh // num_heads
    x = x.reshape(b, num_heads, s, dh)
    x = jnp.transpose(x, (0, 2, 1, 3))
    return x.reshape(b, s, num_heads * dh)


def multi_head_attention(queries, keys, values, valid_lens, p, num_heads):
    B, Sq, H = queries.shape
    Sk = keys.shape[1]
    no_bias = jnp.zeros((H,), jnp.float32)      # d2l MultiHeadAttention: bias=False
    Q = linear(queries.reshape(-1, H), p["wq"], no_bias).reshape(B, Sq, H)
    K = linear(keys.reshape(-1, H), p["wk"], no_bias).reshape(B, Sk, H)
    V = linear(values.reshape(-1, H), p["wv"], no_bias).reshape(B, Sk, H)
    Qh = _split_heads(Q, num_heads)
    Kh = _split_heads(K, num_heads)
    Vh = _split_heads(V, num_heads)
    if valid_lens is None:
        vl = jnp.full((B,), Sk, dtype=jnp.int32)   # full length == no masking
    else:
        vl = valid_lens.astype(jnp.int32)
    vl = jnp.repeat(vl, num_heads)                 # torch.repeat_interleave(dim=0)
    out = scaled_dot_attention(Qh, Kh, Vh, vl)
    out = _merge_heads(out, num_heads)
    return linear(out.reshape(-1, H), p["wo"], no_bias).reshape(B, Sq, H)


@functools.partial(jax.jit, static_argnames=("num_heads",))
def decoder_block(X, enc_outputs, enc_valid_lens, cached_kv, params, num_heads):
    """Eval-mode forward of d2l DecoderBlock i.
    Returns (output, key_values), where key_values is the updated state[2][i]."""
    key_values = X if cached_kv is None else jnp.concatenate([cached_kv, X], axis=1)
    # TODO(synk): training-mode causal dec_valid_lens and dropout (per-query
    # masks + pltpu.prng_*) are not implemented; this is the inference path.
    X2 = multi_head_attention(X, key_values, key_values, None,
                              params["attn1"], num_heads)
    Y = addnorm(X, X2, params["ln1_g"], params["ln1_b"])
    Y2 = multi_head_attention(Y, enc_outputs, enc_outputs, enc_valid_lens,
                              params["attn2"], num_heads)
    Z = addnorm(Y, Y2, params["ln2_g"], params["ln2_b"])
    ffn_out = ffn(Z, params["w1"], params["b1"], params["w2"], params["b2"])
    out = addnorm(Z, ffn_out, params["ln3_g"], params["ln3_b"])
    return out, key_values


# ----------------------------------------------------------------------------
# Pure-JAX reference (mirrors d2l semantics, eval mode)
# ----------------------------------------------------------------------------

def _ref_layernorm(z, g, b):
    mean = jnp.mean(z, axis=-1, keepdims=True)
    var = jnp.mean((z - mean) ** 2, axis=-1, keepdims=True)
    return (z - mean) / jnp.sqrt(var + LN_EPS) * g + b


def _ref_mha(q, k, v, valid_lens, p, num_heads):
    Q = _split_heads(q @ p["wq"], num_heads)
    K = _split_heads(k @ p["wk"], num_heads)
    V = _split_heads(v @ p["wv"], num_heads)
    dh = Q.shape[-1]
    scores = jnp.einsum("bqd,bkd->bqk", Q, K) / math.sqrt(dh)
    if valid_lens is not None:
        vl = jnp.repeat(valid_lens.astype(jnp.int32), num_heads)
        col = jnp.arange(scores.shape[-1])[None, None, :]
        scores = jnp.where(col < vl[:, None, None], scores, MASK_FILL)
    attn = jax.nn.softmax(scores, axis=-1)
    out = _merge_heads(jnp.einsum("bqk,bkd->bqd", attn, V), num_heads)
    return out @ p["wo"]


def _ref_decoder_block(X, enc_outputs, enc_valid_lens, params, num_heads):
    kv = X
    X2 = _ref_mha(X, kv, kv, None, params["attn1"], num_heads)
    Y = _ref_layernorm(X + X2, params["ln1_g"], params["ln1_b"])
    Y2 = _ref_mha(Y, enc_outputs, enc_outputs, enc_valid_lens,
                  params["attn2"], num_heads)
    Z = _ref_layernorm(Y + Y2, params["ln2_g"], params["ln2_b"])
    f = jnp.maximum(Z @ params["w1"] + params["b1"], 0.0) @ params["w2"] + params["b2"]
    return _ref_layernorm(Z + f, params["ln3_g"], params["ln3_b"])


# ----------------------------------------------------------------------------
# Demo / correctness check
# ----------------------------------------------------------------------------

if __name__ == "__main__":
    B, S, H = 2, 8, 128          # lane-dense hidden (multiple of 128)
    HEADS = 4                    # head_dim = 32
    S_ENC = 8
    FFN_H = 256

    key = jax.random.PRNGKey(0)
    ks = jax.random.split(key, 14)

    def rnd(k, shape, scale=0.1):
        return scale * jax.random.normal(k, shape, dtype=jnp.float32)

    params = {
        "attn1": {"wq": rnd(ks[0], (H, H)), "wk": rnd(ks[1], (H, H)),
                  "wv": rnd(ks[2], (H, H)), "wo": rnd(ks[3], (H, H))},
        "attn2": {"wq": rnd(ks[4], (H, H)), "wk": rnd(ks[5], (H, H)),
                  "wv": rnd(ks[6], (H, H)), "wo": rnd(ks[7], (H, H))},
        # nn.LayerNorm default init: weight = 1, bias = 0
        "ln1_g": jnp.ones((H,), jnp.float32), "ln1_b": jnp.zeros((H,), jnp.float32),
        "ln2_g": jnp.ones((H,), jnp.float32), "ln2_b": jnp.zeros((H,), jnp.float32),
        "ln3_g": jnp.ones((H,), jnp.float32), "ln3_b": jnp.zeros((H,), jnp.float32),
        "w1": rnd(ks[8], (H, FFN_H)), "b1": rnd(ks[9], (FFN_H,)),
        "w2": rnd(ks[10], (FFN_H, H)), "b2": rnd(ks[11], (H,)),
    }

    X = jax.random.normal(ks[12], (B, S, H), dtype=jnp.float32)
    enc_outputs = jax.random.normal(ks[13], (B, S_ENC, H), dtype=jnp.float32)
    enc_valid_lens = jnp.array([5, 8], dtype=jnp.int32)

    out, new_kv = decoder_block(X, enc_outputs, enc_valid_lens, None,
                                params, num_heads=HEADS)
    jax.block_until_ready(out)

    ref = _ref_decoder_block(X, enc_outputs, enc_valid_lens, params, HEADS)
    assert out.shape == (B, S, H)
    # Tolerance covers possible MXU-vs-XLA f32 matmul pass-count differences.
    max_err = float(jnp.max(jnp.abs(out - ref)))
    assert jnp.allclose(out, ref, atol=2e-2, rtol=2e-2), (
        f"mismatch vs reference: max abs err = {max_err}")
    assert jnp.allclose(new_kv, X)

    print("KERNEL_OK")
</pallas_src>

<mosaic_0001>
module attributes {stable_mosaic.version = 11 : i64} {
  func.func @linear_kernel(%arg0: i32, %arg1: memref<8x128xf32, #tpu.memory_space<vmem>>, %arg2: memref<128x128xf32, #tpu.memory_space<vmem>>, %arg3: memref<1x128xf32, #tpu.memory_space<vmem>>, %arg4: memref<8x128xf32, #tpu.memory_space<vmem>>) attributes {dimension_semantics = [#tpu.dimension_semantics<parallel>], iteration_bounds = array<i64: 2>, scalar_prefetch = 0 : i64, scratch_operands = 0 : i64, tpu.core_type = #tpu.core_type<tc>, window_params = [{transform_indices = @transform_0, window_bounds = array<i64: 8, 128>}, {pipeline_mode = #tpu.pipeline_mode<synchronous>, transform_indices = @transform_1, window_bounds = array<i64: 128, 128>}, {pipeline_mode = #tpu.pipeline_mode<synchronous>, transform_indices = @transform_2, window_bounds = array<i64: 1, 128>}, {transform_indices = @transform_3, window_bounds = array<i64: 8, 128>}]} {
    %c0 = arith.constant 0 : index
    %c0_0 = arith.constant 0 : index
    %0 = vector.load %arg1[%c0, %c0_0] : memref<8x128xf32, #tpu.memory_space<vmem>>, vector<8x128xf32>
    %c0_1 = arith.constant 0 : index
    %c0_2 = arith.constant 0 : index
    %1 = vector.load %arg2[%c0_1, %c0_2] : memref<128x128xf32, #tpu.memory_space<vmem>>, vector<128x128xf32>
    %cst = arith.constant dense<0.000000e+00> : vector<8x128xf32>
    %2 = tpu.matmul %0, %1, %cst {dimension_numbers = #tpu.dot_dimension_numbers<[1], [0], [0], [1], [0, 0, 1, 1], [], []>} : vector<8x128xf32>, vector<128x128xf32>, vector<8x128xf32> -> vector<8x128xf32>
    %c0_3 = arith.constant 0 : index
    %c0_4 = arith.constant 0 : index
    %3 = vector.load %arg3[%c0_3, %c0_4] : memref<1x128xf32, #tpu.memory_space<vmem>>, vector<1x128xf32>
    %4 = vector.broadcast %3 : vector<1x128xf32> to vector<8x128xf32>
    %5 = arith.addf %2, %4 : vector<8x128xf32>
    %c0_5 = arith.constant 0 : index
    %c0_6 = arith.constant 0 : index
    %6 = vector.load %arg4[%c0_5, %c0_6] : memref<8x128xf32, #tpu.memory_space<vmem>>, vector<8x128xf32>
    tpu.vector_store %arg4[%c0_5, %c0_6], %5 {strides = array<i32>} : memref<8x128xf32, #tpu.memory_space<vmem>>, vector<8x128xf32>,
    return
  }
  func.func @transform_0(%arg0: i32) -> (i32, i32) {
    %c0_i32 = arith.constant 0 : i32
    %c0_i32_0 = arith.constant 0 : i32
    return %arg0, %c0_i32 : i32, i32
  }
  func.func @transform_1(%arg0: i32) -> (i32, i32) {
    %c0_i32 = arith.constant 0 : i32
    %c0_i32_0 = arith.constant 0 : i32
    %c0_i32_1 = arith.constant 0 : i32
    return %c0_i32, %c0_i32_0 : i32, i32
  }
  func.func @transform_2(%arg0: i32) -> (i32, i32) {
    %c0_i32 = arith.constant 0 : i32
    %c0_i32_0 = arith.constant 0 : i32
    %c0_i32_1 = arith.constant 0 : i32
    return %c0_i32, %c0_i32_0 : i32, i32
  }
  func.func @transform_3(%arg0: i32) -> (i32, i32) {
    %c0_i32 = arith.constant 0 : i32
    %c0_i32_0 = arith.constant 0 : i32
    return %arg0, %c0_i32 : i32, i32
  }
}

module attributes {stable_mosaic.version = 11 : i64} {
  func.func @linear_kernel(%arg0: i32, %arg1: memref<8x128xf32, #tpu.memory_space<vmem>>, %arg2: memref<128x128xf32, #tpu.memory_space<vmem>>, %arg3: memref<1x128xf32, #tpu.memory_space<vmem>>, %arg4: memref<8x128xf32, #tpu.memory_space<vmem>>) attributes {dimension_semantics = [#tpu.dimension_semantics<parallel>], iteration_bounds = array<i64: 2>, scalar_prefetch = 0 : i64, scratch_operands = 0 : i64, tpu.core_type = #tpu.core_type<tc>, window_params = [{transform_indices = @transform_0, window_bounds = array<i64: 8, 128>}, {pipeline_mode = #tpu.pipeline_mode<synchronous>, transform_indices = @transform_1, window_bounds = array<i64: 128, 128>}, {pipeline_mode = #tpu.pipeline_mode<synchronous>, transform_indices = @transform_2, window_bounds = array<i64: 1, 128>}, {transform_indices = @transform_3, window_bounds = array<i64: 8, 128>}]} {
    %c0 = arith.constant 0 : index
    %c0_0 = arith.constant 0 : index
    %0 = vector.load %arg1[%c0, %c0_0] : memref<8x128xf32, #tpu.memory_space<vmem>>, vector<8x128xf32>
    %c0_1 = arith.constant 0 : index
    %c0_2 = arith.constant 0 : index
    %1 = vector.load %arg2[%c0_1, %c0_2] : memref<128x128xf32, #tpu.memory_space<vmem>>, vector<128x128xf32>
    %cst = arith.constant dense<0.000000e+00> : vector<8x128xf32>
    %2 = tpu.matmul %0, %1, %cst {dimension_numbers = #tpu.dot_dimension_numbers<[1], [0], [0], [1], [0, 0, 1, 1], [], []>} : vector<8x128xf32>, vector<128x128xf32>, vector<8x128xf32> -> vector<8x128xf32>
    %c0_3 = arith.constant 0 : index
    %c0_4 = arith.constant 0 : index
    %3 = vector.load %arg3[%c0_3, %c0_4] : memref<1x128xf32, #tpu.memory_space<vmem>>, vector<1x128xf32>
    %4 = vector.broadcast %3 : vector<1x128xf32> to vector<8x128xf32>
    %5 = arith.addf %2, %4 : vector<8x128xf32>
    %c0_5 = arith.constant 0 : index
    %c0_6 = arith.constant 0 : index
    %6 = vector.load %arg4[%c0_5, %c0_6] : memref<8x128xf32, #tpu.memory_space<vmem>>, vector<8x128xf32>
    tpu.vector_store %arg4[%c0_5, %c0_6], %5 {strides = array<i32>} : memref<8x128xf32, #tpu.memory_space<vmem>>, vector<8x128xf32>,
    return
  }
  func.func @transform_0(%arg0: i32) -> (i32, i32) {
    %c0_i32 = arith.constant 0 : i32
    %c0_i32_0 = arith.constant 0 : i32
    return %arg0, %c0_i32 : i32, i32
  }
  func.func @transform_1(%arg0: i32) -> (i32, i32) {
    %c0_i32 = arith.constant 0 : i32
    %c0_i32_0 = arith.constant 0 : i32
    %c0_i32_1 = arith.constant 0 : i32
    return %c0_i32, %c0_i32_0 : i32, i32
  }
  func.func @transform_2(%arg0: i32) -> (i32, i32) {
    %c0_i32 = arith.constant 0 : i32
    %c0_i32_0 = arith.constant 0 : i32
    %c0_i32_1 = arith.constant 0 : i32
    return %c0_i32, %c0_i32_0 : i32, i32
  }
  func.func @transform_3(%arg0: i32) -> (i32, i32) {
    %c0_i32 = arith.constant 0 : i32
    %c0_i32_0 = arith.constant 0 : i32
    return %arg0, %c0_i32 : i32, i32
  }
}

module attributes {stable_mosaic.version = 11 : i64} {
  func.func @attention_kernel(%arg0: i32, %arg1: memref<8xi32, #tpu.memory_space<smem>>, %arg2: memref<1x8x32xf32, #tpu.memory_space<vmem>>, %arg3: memref<1x8x32xf32, #tpu.memory_space<vmem>>, %arg4: memref<1x8x32xf32, #tpu.memory_space<vmem>>, %arg5: memref<1x8x32xf32, #tpu.memory_space<vmem>>) attributes {dimension_semantics = [#tpu.dimension_semantics<parallel>], iteration_bounds = array<i64: 8>, scalar_prefetch = 1 : i64, scratch_operands = 0 : i64, tpu.core_type = #tpu.core_type<tc>, window_params = [{transform_indices = @transform_0, window_bounds = array<i64: 1, 8, 32>}, {transform_indices = @transform_1, window_bounds = array<i64: 1, 8, 32>}, {transform_indices = @transform_2, window_bounds = array<i64: 1, 8, 32>}, {transform_indices = @transform_3, window_bounds = array<i64: 1, 8, 32>}]} {
    %c0 = arith.constant 0 : index
    %c0_0 = arith.constant 0 : index
    %c0_1 = arith.constant 0 : index
    %0 = vector.load %arg2[%c0, %c0_0, %c0_1] : memref<1x8x32xf32, #tpu.memory_space<vmem>>, vector<1x8x32xf32>
    %1 = vector.shape_cast %0 : vector<1x8x32xf32> to vector<8x32xf32>
    %c0_2 = arith.constant 0 : index
    %c0_3 = arith.constant 0 : index
    %c0_4 = arith.constant 0 : index
    %2 = vector.load %arg3[%c0_2, %c0_3, %c0_4] : memref<1x8x32xf32, #tpu.memory_space<vmem>>, vector<1x8x32xf32>
    %3 = vector.shape_cast %2 : vector<1x8x32xf32> to vector<8x32xf32>
    %c0_5 = arith.constant 0 : index
    %c0_6 = arith.constant 0 : index
    %c0_7 = arith.constant 0 : index
    %4 = vector.load %arg4[%c0_5, %c0_6, %c0_7] : memref<1x8x32xf32, #tpu.memory_space<vmem>>, vector<1x8x32xf32>
    %5 = vector.shape_cast %4 : vector<1x8x32xf32> to vector<8x32xf32>
    %cst = arith.constant dense<0.000000e+00> : vector<8x8xf32>
    %6 = tpu.matmul %1, %3, %cst {dimension_numbers = #tpu.dot_dimension_numbers<[1], [1], [0], [0], [0, 0, 1, 0], [], []>} : vector<8x32xf32>, vector<8x32xf32>, vector<8x8xf32> -> vector<8x8xf32>
    %cst_8 = arith.constant 0.176776692 : f32
    %7 = vector.broadcast %cst_8 : f32 to vector<8x8xf32>
    %8 = arith.mulf %6, %7 : vector<8x8xf32>
    %9 = arith.index_cast %arg0 : i32 to index
    %10 = memref.load %arg1[%9] : memref<8xi32, #tpu.memory_space<smem>>
    %11 = tpu.iota {dimensions = array<i32: 1>} : vector<8x8xi32>
    %12 = vector.broadcast %10 : i32 to vector<8x8xi32>
    %13 = arith.cmpi slt, %11, %12 : vector<8x8xi32>
    %cst_9 = arith.constant -1.000000e+06 : f32
    %14 = vector.broadcast %cst_9 : f32 to vector<8x8xf32>
    %15 = arith.select %13, %8, %14 : vector<8x8xi1>, vector<8x8xf32>
    %cst_10 = arith.constant dense<0xFF800000> : vector<8xf32>
    %16 = vector.multi_reduction <maximumf>, %15, %cst_10 [1] : vector<8x8xf32> to vector<8xf32>
    %17 = vector.shape_cast %16 : vector<8xf32> to vector<8x1xf32>
    %18 = vector.broadcast %17 : vector<8x1xf32> to vector<8x8xf32>
    %19 = arith.subf %15, %18 : vector<8x8xf32>
    %20 = math.exp %19 : vector<8x8xf32>
    %cst_11 = arith.constant dense<0.000000e+00> : vector<8xf32>
    %21 = vector.multi_reduction <add>, %20, %cst_11 [1] : vector<8x8xf32> to vector<8xf32>
    %22 = vector.shape_cast %21 : vector<8xf32> to vector<8x1xf32>
    %23 = vector.broadcast %22 : vector<8x1xf32> to vector<8x8xf32>
    %24 = arith.divf %20, %23 : vector<8x8xf32>
    %cst_12 = arith.constant dense<0.000000e+00> : vector<8x32xf32>
    %25 = tpu.matmul %24, %5, %cst_12 {dimension_numbers = #tpu.dot_dimension_numbers<[1], [0], [0], [1], [0, 0, 1, 1], [], []>} : vector<8x8xf32>, vector<8x32xf32>, vector<8x32xf32> -> vector<8x32xf32>
    %c0_13 = arith.constant 0 : index
    %c0_14 = arith.constant 0 : index
    %c0_15 = arith.constant 0 : index
    %26 = vector.load %arg5[%c0_13, %c0_14, %c0_15] : memref<1x8x32xf32, #tpu.memory_space<vmem>>, vector<1x8x32xf32>
    %27 = vector.shape_cast %26 : vector<1x8x32xf32> to vector<8x32xf32>
    %28 = vector.shape_cast %25 : vector<8x32xf32> to vector<1x8x32xf32>
    tpu.vector_store %arg5[%c0_13, %c0_14, %c0_15], %28 {strides = array<i32>} : memref<1x8x32xf32, #tpu.memory_space<vmem>>, vector<1x8x32xf32>,
    return
  }
  func.func @transform_0(%arg0: i32, %arg1: memref<8xi32, #tpu.memory_space<smem>>) -> (i32, i32, i32) {
    %c0_i32 = arith.constant 0 : i32
    %c0_i32_0 = arith.constant 0 : i32
    %c0_i32_1 = arith.constant 0 : i32
    return %arg0, %c0_i32, %c0_i32_0 : i32, i32, i32
  }
  func.func @transform_1(%arg0: i32, %arg1: memref<8xi32, #tpu.memory_space<smem>>) -> (i32, i32, i32) {
    %c0_i32 = arith.constant 0 : i32
    %c0_i32_0 = arith.constant 0 : i32
    %c0_i32_1 = arith.constant 0 : i32
    return %arg0, %c0_i32, %c0_i32_0 : i32, i32, i32
  }
  func.func @transform_2(%arg0: i32, %arg1: memref<8xi32, #tpu.memory_space<smem>>) -> (i32, i32, i32) {
    %c0_i32 = arith.constant 0 : i32
    %c0_i32_0 = arith.constant 0 : i32
    %c0_i32_1 = arith.constant 0 : i32
    return %arg0, %c0_i32, %c0_i32_0 : i32, i32, i32
  }
  func.func @transform_3(%arg0: i32, %arg1: memref<8xi32, #tpu.memory_space<smem>>) -> (i32, i32, i32) {
    %c0_i32 = arith.constant 0 : i32
    %c0_i32_0 = arith.constant 0 : i32
    %c0_i32_1 = arith.constant 0 : i32
    return %arg0, %c0_i32, %c0_i32_0 : i32, i32, i32
  }
}

module attributes {stable_mosaic.version = 11 : i64} {
  func.func @addnorm_kernel(%arg0: i32, %arg1: memref<8x128xf32, #tpu.memory_space<vmem>>, %arg2: memref<8x128xf32, #tpu.memory_space<vmem>>, %arg3: memref<1x128xf32, #tpu.memory_space<vmem>>, %arg4: memref<1x128xf32, #tpu.memory_space<vmem>>, %arg5: memref<8x128xf32, #tpu.memory_space<vmem>>) attributes {dimension_semantics = [#tpu.dimension_semantics<parallel>], iteration_bounds = array<i64: 2>, scalar_prefetch = 0 : i64, scratch_operands = 0 : i64, tpu.core_type = #tpu.core_type<tc>, window_params = [{transform_indices = @transform_0, window_bounds = array<i64: 8, 128>}, {transform_indices = @transform_1, window_bounds = array<i64: 8, 128>}, {pipeline_mode = #tpu.pipeline_mode<synchronous>, transform_indices = @transform_2, window_bounds = array<i64: 1, 128>}, {pipeline_mode = #tpu.pipeline_mode<synchronous>, transform_indices = @transform_3, window_bounds = array<i64: 1, 128>}, {transform_indices = @transform_4, window_bounds = array<i64: 8, 128>}]} {
    %c0 = arith.constant 0 : index
    %c0_0 = arith.constant 0 : index
    %0 = vector.load %arg2[%c0, %c0_0] : memref<8x128xf32, #tpu.memory_space<vmem>>, vector<8x128xf32>
    %c0_1 = arith.constant 0 : index
    %c0_2 = arith.constant 0 : index
    %1 = vector.load %arg1[%c0_1, %c0_2] : memref<8x128xf32, #tpu.memory_space<vmem>>, vector<8x128xf32>
    %2 = arith.addf %0, %1 : vector<8x128xf32>
    %cst = arith.constant dense<0.000000e+00> : vector<8xf32>
    %3 = vector.multi_reduction <add>, %2, %cst [1] : vector<8x128xf32> to vector<8xf32>
    %4 = vector.shape_cast %3 : vector<8xf32> to vector<8x1xf32>
    %cst_3 = arith.constant 1.280000e+02 : f32
    %5 = vector.broadcast %cst_3 : f32 to vector<8x1xf32>
    %6 = arith.divf %4, %5 : vector<8x1xf32>
    %7 = vector.broadcast %6 : vector<8x1xf32> to vector<8x128xf32>
    %8 = arith.subf %2, %7 : vector<8x128xf32>
    %9 = arith.mulf %8, %8 : vector<8x128xf32>
    %cst_4 = arith.constant dense<0.000000e+00> : vector<8xf32>
    %10 = vector.multi_reduction <add>, %9, %cst_4 [1] : vector<8x128xf32> to vector<8xf32>
    %11 = vector.shape_cast %10 : vector<8xf32> to vector<8x1xf32>
    %cst_5 = arith.constant 1.280000e+02 : f32
    %12 = vector.broadcast %cst_5 : f32 to vector<8x1xf32>
    %13 = arith.divf %11, %12 : vector<8x1xf32>
    %cst_6 = arith.constant 9.99999974E-6 : f32
    %14 = vector.broadcast %cst_6 : f32 to vector<8x1xf32>
    %15 = arith.addf %13, %14 : vector<8x1xf32>
    %16 = math.rsqrt %15 : vector<8x1xf32>
    %17 = vector.broadcast %16 : vector<8x1xf32> to vector<8x128xf32>
    %18 = arith.mulf %8, %17 : vector<8x128xf32>
    %c0_7 = arith.constant 0 : index
    %c0_8 = arith.constant 0 : index
    %19 = vector.load %arg3[%c0_7, %c0_8] : memref<1x128xf32, #tpu.memory_space<vmem>>, vector<1x128xf32>
    %20 = vector.broadcast %19 : vector<1x128xf32> to vector<8x128xf32>
    %21 = arith.mulf %18, %20 : vector<8x128xf32>
    %c0_9 = arith.constant 0 : index
    %c0_10 = arith.constant 0 : index
    %22 = vector.load %arg4[%c0_9, %c0_10] : memref<1x128xf32, #tpu.memory_space<vmem>>, vector<1x128xf32>
    %23 = vector.broadcast %22 : vector<1x128xf32> to vector<8x128xf32>
    %24 = arith.addf %21, %23 : vector<8x128xf32>
    %c0_11 = arith.constant 0 : index
    %c0_12 = arith.constant 0 : index
    %25 = vector.load %arg5[%c0_11, %c0_12] : memref<8x128xf32, #tpu.memory_space<vmem>>, vector<8x128xf32>
    tpu.vector_store %arg5[%c0_11, %c0_12], %24 {strides = array<i32>} : memref<8x128xf32, #tpu.memory_space<vmem>>, vector<8x128xf32>,
    return
  }
  func.func @transform_0(%arg0: i32) -> (i32, i32) {
    %c0_i32 = arith.constant 0 : i32
    %c0_i32_0 = arith.constant 0 : i32
    return %arg0, %c0_i32 : i32, i32
  }
  func.func @transform_1(%arg0: i32) -> (i32, i32) {
    %c0_i32 = arith.constant 0 : i32
    %c0_i32_0 = arith.constant 0 : i32
    return %arg0, %c0_i32 : i32, i32
  }
  func.func @transform_2(%arg0: i32) -> (i32, i32) {
    %c0_i32 = arith.constant 0 : i32
    %c0_i32_0 = arith.constant 0 : i32
    %c0_i32_1 = arith.constant 0 : i32
    return %c0_i32, %c0_i32_0 : i32, i32
  }
  func.func @transform_3(%arg0: i32) -> (i32, i32) {
    %c0_i32 = arith.constant 0 : i32
    %c0_i32_0 = arith.constant 0 : i32
    %c0_i32_1 = arith.constant 0 : i32
    return %c0_i32, %c0_i32_0 : i32, i32
  }
  func.func @transform_4(%arg0: i32) -> (i32, i32) {
    %c0_i32 = arith.constant 0 : i32
    %c0_i32_0 = arith.constant 0 : i32
    return %arg0, %c0_i32 : i32, i32
  }
}

module attributes {stable_mosaic.version = 11 : i64} {
  func.func @ffn_kernel(%arg0: i32, %arg1: memref<8x128xf32, #tpu.memory_space<vmem>>, %arg2: memref<128x256xf32, #tpu.memory_space<vmem>>, %arg3: memref<1x256xf32, #tpu.memory_space<vmem>>, %arg4: memref<256x128xf32, #tpu.memory_space<vmem>>, %arg5: memref<1x128xf32, #tpu.memory_space<vmem>>, %arg6: memref<8x128xf32, #tpu.memory_space<vmem>>) attributes {dimension_semantics = [#tpu.dimension_semantics<parallel>], iteration_bounds = array<i64: 2>, scalar_prefetch = 0 : i64, scratch_operands = 0 : i64, tpu.core_type = #tpu.core_type<tc>, window_params = [{transform_indices = @transform_0, window_bounds = array<i64: 8, 128>}, {pipeline_mode = #tpu.pipeline_mode<synchronous>, transform_indices = @transform_1, window_bounds = array<i64: 128, 256>}, {pipeline_mode = #tpu.pipeline_mode<synchronous>, transform_indices = @transform_2, window_bounds = array<i64: 1, 256>}, {pipeline_mode = #tpu.pipeline_mode<synchronous>, transform_indices = @transform_3, window_bounds = array<i64: 256, 128>}, {pipeline_mode = #tpu.pipeline_mode<synchronous>, transform_indices = @transform_4, window_bounds = array<i64: 1, 128>}, {transform_indices = @transform_5, window_bounds = array<i64: 8, 128>}]} {
    %c0 = arith.constant 0 : index
    %c0_0 = arith.constant 0 : index
    %0 = vector.load %arg1[%c0, %c0_0] : memref<8x128xf32, #tpu.memory_space<vmem>>, vector<8x128xf32>
    %c0_1 = arith.constant 0 : index
    %c0_2 = arith.constant 0 : index
    %1 = vector.load %arg2[%c0_1, %c0_2] : memref<128x256xf32, #tpu.memory_space<vmem>>, vector<128x256xf32>
    %cst = arith.constant dense<0.000000e+00> : vector<8x256xf32>
    %2 = tpu.matmul %0, %1, %cst {dimension_numbers = #tpu.dot_dimension_numbers<[1], [0], [0], [1], [0, 0, 1, 1], [], []>} : vector<8x128xf32>, vector<128x256xf32>, vector<8x256xf32> -> vector<8x256xf32>
    %c0_3 = arith.constant 0 : index
    %c0_4 = arith.constant 0 : index
    %3 = vector.load %arg3[%c0_3, %c0_4] : memref<1x256xf32, #tpu.memory_space<vmem>>, vector<1x256xf32>
    %4 = vector.broadcast %3 : vector<1x256xf32> to vector<8x256xf32>
    %5 = arith.addf %2, %4 : vector<8x256xf32>
    %cst_5 = arith.constant 0.000000e+00 : f32
    %6 = vector.broadcast %cst_5 : f32 to vector<8x256xf32>
    %7 = arith.maximumf %5, %6 : vector<8x256xf32>
    %c0_6 = arith.constant 0 : index
    %c0_7 = arith.constant 0 : index
    %8 = vector.load %arg4[%c0_6, %c0_7] : memref<256x128xf32, #tpu.memory_space<vmem>>, vector<256x128xf32>
    %cst_8 = arith.constant dense<0.000000e+00> : vector<8x128xf32>
    %9 = tpu.matmul %7, %8, %cst_8 {dimension_numbers = #tpu.dot_dimension_numbers<[1], [0], [0], [1], [0, 0, 1, 1], [], []>} : vector<8x256xf32>, vector<256x128xf32>, vector<8x128xf32> -> vector<8x128xf32>
    %c0_9 = arith.constant 0 : index
    %c0_10 = arith.constant 0 : index
    %10 = vector.load %arg5[%c0_9, %c0_10] : memref<1x128xf32, #tpu.memory_space<vmem>>, vector<1x128xf32>
    %11 = vector.broadcast %10 : vector<1x128xf32> to vector<8x128xf32>
    %12 = arith.addf %9, %11 : vector<8x128xf32>
    %c0_11 = arith.constant 0 : index
    %c0_12 = arith.constant 0 : index
    %13 = vector.load %arg6[%c0_11, %c0_12] : memref<8x128xf32, #tpu.memory_space<vmem>>, vector<8x128xf32>
    tpu.vector_store %arg6[%c0_11, %c0_12], %12 {strides = array<i32>} : memref<8x128xf32, #tpu.memory_space<vmem>>, vector<8x128xf32>,
    return
  }
  func.func @transform_0(%arg0: i32) -> (i32, i32) {
    %c0_i32 = arith.constant 0 : i32
    %c0_i32_0 = arith.constant 0 : i32
    return %arg0, %c0_i32 : i32, i32
  }
  func.func @transform_1(%arg0: i32) -> (i32, i32) {
    %c0_i32 = arith.constant 0 : i32
    %c0_i32_0 = arith.constant 0 : i32
    %c0_i32_1 = arith.constant 0 : i32
    return %c0_i32, %c0_i32_0 : i32, i32
  }
  func.func @transform_2(%arg0: i32) -> (i32, i32) {
    %c0_i32 = arith.constant 0 : i32
    %c0_i32_0 = arith.constant 0 : i32
    %c0_i32_1 = arith.constant 0 : i32
    return %c0_i32, %c0_i32_0 : i32, i32
  }
  func.func @transform_3(%arg0: i32) -> (i32, i32) {
    %c0_i32 = arith.constant 0 : i32
    %c0_i32_0 = arith.constant 0 : i32
    %c0_i32_1 = arith.constant 0 : i32
    return %c0_i32, %c0_i32_0 : i32, i32
  }
  func.func @transform_4(%arg0: i32) -> (i32, i32) {
    %c0_i32 = arith.constant 0 : i32
    %c0_i32_0 = arith.constant 0 : i32
    %c0_i32_1 = arith.constant 0 : i32
    return %c0_i32, %c0_i32_0 : i32, i32
  }
  func.func @transform_5(%arg0: i32) -> (i32, i32) {
    %c0_i32 = arith.constant 0 : i32
    %c0_i32_0 = arith.constant 0 : i32
    return %arg0, %c0_i32 : i32, i32
  }
}

module attributes {stable_mosaic.version = 11 : i64} {
  func.func @addnorm_kernel(%arg0: i32, %arg1: memref<8x128xf32, #tpu.memory_space<vmem>>, %arg2: memref<8x128xf32, #tpu.memory_space<vmem>>, %arg3: memref<1x128xf32, #tpu.memory_space<vmem>>, %arg4: memref<1x128xf32, #tpu.memory_space<vmem>>, %arg5: memref<8x128xf32, #tpu.memory_space<vmem>>) attributes {dimension_semantics = [#tpu.dimension_semantics<parallel>], iteration_bounds = array<i64: 2>, scalar_prefetch = 0 : i64, scratch_operands = 0 : i64, tpu.core_type = #tpu.core_type<tc>, window_params = [{transform_indices = @transform_0, window_bounds = array<i64: 8, 128>}, {transform_indices = @transform_1, window_bounds = array<i64: 8, 128>}, {pipeline_mode = #tpu.pipeline_mode<synchronous>, transform_indices = @transform_2, window_bounds = array<i64: 1, 128>}, {pipeline_mode = #tpu.pipeline_mode<synchronous>, transform_indices = @transform_3, window_bounds = array<i64: 1, 128>}, {transform_indices = @transform_4, window_bounds = array<i64: 8, 128>}]} {
    %c0 = arith.constant 0 : index
    %c0_0 = arith.constant 0 : index
    %0 = vector.load %arg2[%c0, %c0_0] : memref<8x128xf32, #tpu.memory_space<vmem>>, vector<8x128xf32>
    %c0_1 = arith.constant 0 : index
    %c0_2 = arith.constant 0 : index
    %1 = vector.load %arg1[%c0_1, %c0_2] : memref<8x128xf32, #tpu.memory_space<vmem>>, vector<8x128xf32>
    %2 = arith.addf %0, %1 : vector<8x128xf32>
    %cst = arith.constant dense<0.000000e+00> : vector<8xf32>
    %3 = vector.multi_reduction <add>, %2, %cst [1] : vector<8x128xf32> to vector<8xf32>
    %4 = vector.shape_cast %3 : vector<8xf32> to vector<8x1xf32>
    %cst_3 = arith.constant 1.280000e+02 : f32
    %5 = vector.broadcast %cst_3 : f32 to vector<8x1xf32>
    %6 = arith.divf %4, %5 : vector<8x1xf32>
    %7 = vector.broadcast %6 : vector<8x1xf32> to vector<8x128xf32>
    %8 = arith.subf %2, %7 : vector<8x128xf32>
    %9 = arith.mulf %8, %8 : vector<8x128xf32>
    %cst_4 = arith.constant dense<0.000000e+00> : vector<8xf32>
    %10 = vector.multi_reduction <add>, %9, %cst_4 [1] : vector<8x128xf32> to vector<8xf32>
    %11 = vector.shape_cast %10 : vector<8xf32> to vector<8x1xf32>
    %cst_5 = arith.constant 1.280000e+02 : f32
    %12 = vector.broadcast %cst_5 : f32 to vector<8x1xf32>
    %13 = arith.divf %11, %12 : vector<8x1xf32>
    %cst_6 = arith.constant 9.99999974E-6 : f32
    %14 = vector.broadcast %cst_6 : f32 to vector<8x1xf32>
    %15 = arith.addf %13, %14 : vector<8x1xf32>
    %16 = math.rsqrt %15 : vector<8x1xf32>
    %17 = vector.broadcast %16 : vector<8x1xf32> to vector<8x128xf32>
    %18 = arith.mulf %8, %17 : vector<8x128xf32>
    %c0_7 = arith.constant 0 : index
    %c0_8 = arith.constant 0 : index
    %19 = vector.load %arg3[%c0_7, %c0_8] : memref<1x128xf32, #tpu.memory_space<vmem>>, vector<1x128xf32>
    %20 = vector.broadcast %19 : vector<1x128xf32> to vector<8x128xf32>
    %21 = arith.mulf %18, %20 : vector<8x128xf32>
    %c0_9 = arith.constant 0 : index
    %c0_10 = arith.constant 0 : index
    %22 = vector.load %arg4[%c0_9, %c0_10] : memref<1x128xf32, #tpu.memory_space<vmem>>, vector<1x128xf32>
    %23 = vector.broadcast %22 : vector<1x128xf32> to vector<8x128xf32>
    %24 = arith.addf %21, %23 : vector<8x128xf32>
    %c0_11 = arith.constant 0 : index
    %c0_12 = arith.constant 0 : index
    %25 = vector.load %arg5[%c0_11, %c0_12] : memref<8x128xf32, #tpu.memory_space<vmem>>, vector<8x128xf32>
    tpu.vector_store %arg5[%c0_11, %c0_12], %24 {strides = array<i32>} : memref<8x128xf32, #tpu.memory_space<vmem>>, vector<8x128xf32>,
    return
  }
  func.func @transform_0(%arg0: i32) -> (i32, i32) {
    %c0_i32 = arith.constant 0 : i32
    %c0_i32_0 = arith.constant 0 : i32
    return %arg0, %c0_i32 : i32, i32
  }
  func.func @transform_1(%arg0: i32) -> (i32, i32) {
    %c0_i32 = arith.constant 0 : i32
    %c0_i32_0 = arith.constant 0 : i32
    return %arg0, %c0_i32 : i32, i32
  }
  func.func @transform_2(%arg0: i32) -> (i32, i32) {
    %c0_i32 = arith.constant 0 : i32
    %c0_i32_0 = arith.constant 0 : i32
    %c0_i32_1 = arith.constant 0 : i32
    return %c0_i32, %c0_i32_0 : i32, i32
  }
  func.func @transform_3(%arg0: i32) -> (i32, i32) {
    %c0_i32 = arith.constant 0 : i32
    %c0_i32_0 = arith.constant 0 : i32
    %c0_i32_1 = arith.constant 0 : i32
    return %c0_i32, %c0_i32_0 : i32, i32
  }
  func.func @transform_4(%arg0: i32) -> (i32, i32) {
    %c0_i32 = arith.constant 0 : i32
    %c0_i32_0 = arith.constant 0 : i32
    return %arg0, %c0_i32 : i32, i32
  }
}

</mosaic_0001>

<llo_original>
// kernel: decoder_block.14
$region0: #{decoder_block.14}
  #allocation0 [shape = 'u32[]', space=smem, size = 0x4, offset = 0x4, fixed_abs, tag = 'smem constant byte address 0x4 - core index']
  #allocation1 [shape = 'u32[144,128]{1,0:T(1,128)}', space=vmem, size = 0x12000, scoped, tag = 'internal scratch']
  %s0 = inlined_call_operand.vmem [shape: f32[16,128], index: 0, kind: input, shape index: {}]
  %s1 = inlined_call_operand.hbm [shape: f32[128,128], index: 1, kind: input, shape index: {}]
  %s2 = inlined_call_operand.vmem [shape: f32[1,128], index: 2, kind: input, shape index: {}]
  %s3 = inlined_call_operand.vmem [shape: f32[16,128], index: 3, kind: output, shape index: {}]
  %s4 = sld [smem:[#allocation0]]
  $region49: #{decoder_block.14} parent=0
    _
  %s6 = ssub.s32 1, %s4
  %s7 = scalar_select 0, %s6, %s4
  $region1: #{decoder_block.14} parent=0
    #allocation2 [shape = 'u8[65536]{0}', space=vmem, size = 0x10000, scoped, tag = 'input window, operand 1, single buffered']
    #allocation3 [shape = 's32[2]{0}', space=sflag, size = 0x8, scoped, tag = 'scoped memory for decoder_block.14']
    %8 = vsyncpa [#allocation3], 0
    loop: start=0, step=1, limit=4
    $region2: #{decoder_block.14} parent=1 // loop_pre_header
      _
    $region3: #{decoder_block.14} parent=1 // loop_header
      %s10 = sphi 0, %s14
      %p11 = scmp.ge.s32.totalorder %s10, 4
      %s20 = sphi 0, %s22
      %s23 = sphi 0, %s20
      %s24 = sphi 0, %s23
      %s40 = sphi 0, %s24
      %s44 = sphi 0, %s44
      %s46 = sphi 0, %s44
      %s47 = sphi 0, %s46
      %s61 = sphi 0, %s47
      %s65 = sphi 0, %s65
      %s67 = sphi 0, %s65
      %s68 = sphi 0, %s67
      %s82 = sphi 0, %s68
      %s88 = sphi 0, %s90
      %s91 = sphi 0, %s88
      %s92 = sphi 0, %s91
      %s108 = sphi 0, %s92
    $region4: #{decoder_block.14} parent=1 // loop_header_branch
      %13 = sbr.rel (%p11) target = $region8
    $region5: #{decoder_block.14} parent=1 // loop_body
      %s15 = ssub.s32 %s10, 1
      %s16 = ssub.s32 %s10, 2
      %s17 = sadd.s32 %s10, 1
      %s18 = ssub.s32 %s10, %s17
      %p19 = scmp.eq.s32.totalorder %s18, 0
      %s21 = sadd.s32 %s20, 1
      %s22 = scalar_select %p19, %s20, %s21
      %p25 = pneg %p19
      %p26 = scmp.eq.s32.totalorder %s10, 1
      %p27 = por %p25, %p26
      %p28 = scmp.ne.s32.totalorder %s20, %s23
      %p29 = scmp.eq.s32.totalorder %s10, 0
      %p30 = por %p28, %p29
      %p31 = scmp.ne.s32.totalorder %s20, %s23
      %p32 = scmp.eq.s32.totalorder %s15, 1
      %p33 = por %p31, %p32
      %p34 = scmp.ne.s32.totalorder %s23, %s24
      %p35 = scmp.eq.s32.totalorder %s15, 0
      %p36 = por %p34, %p35
      %p37 = scmp.ne.s32.totalorder %s23, %s24
      %p38 = scmp.eq.s32.totalorder %s16, 1
      %p39 = por %p37, %p38
      %p41 = scmp.ne.s32.totalorder %s24, %s40
      %p42 = scmp.eq.s32.totalorder %s16, 0
      %p43 = por %p41, %p42
      %s45 = sadd.s32 %s44, 1
      %p48 = scmp.eq.s32.totalorder %s10, 1
      %p49 = scmp.ne.s32.totalorder %s44, %s46
      %p50 = scmp.eq.s32.totalorder %s10, 0
      %p51 = por %p49, %p50
      %p52 = scmp.ne.s32.totalorder %s44, %s46
      %p53 = scmp.eq.s32.totalorder %s15, 1
      %p54 = por %p52, %p53
      %p55 = scmp.ne.s32.totalorder %s46, %s47
      %p56 = scmp.eq.s32.totalorder %s15, 0
      %p57 = por %p55, %p56
      %p58 = scmp.ne.s32.totalorder %s46, %s47
      %p59 = scmp.eq.s32.totalorder %s16, 1
      %p60 = por %p58, %p59
      %p62 = scmp.ne.s32.totalorder %s47, %s61
      %p63 = scmp.eq.s32.totalorder %s16, 0
      %p64 = por %p62, %p63
      %s66 = sadd.s32 %s65, 1
      %p69 = scmp.eq.s32.totalorder %s10, 1
      %p70 = scmp.ne.s32.totalorder %s65, %s67
      %p71 = scmp.eq.s32.totalorder %s10, 0
      %p72 = por %p70, %p71
      %p73 = scmp.ne.s32.totalorder %s65, %s67
      %p74 = scmp.eq.s32.totalorder %s15, 1
      %p75 = por %p73, %p74
      %p76 = scmp.ne.s32.totalorder %s67, %s68
      %p77 = scmp.eq.s32.totalorder %s15, 0
      %p78 = por %p76, %p77
      %p79 = scmp.ne.s32.totalorder %s67, %s68
      %p80 = scmp.eq.s32.totalorder %s16, 1
      %p81 = por %p79, %p80
      %p83 = scmp.ne.s32.totalorder %s68, %s82
      %p84 = scmp.eq.s32.totalorder %s16, 0
      %p85 = por %p83, %p84
      %s86 = ssub.s32 %s10, %s17
      %p87 = scmp.eq.s32.totalorder %s86, 0
      %s89 = sadd.s32 %s88, 1
      %s90 = scalar_select %p87, %s88, %s89
      %p93 = pneg %p87
      %p94 = scmp.eq.s32.totalorder %s10, 1
      %p95 = por %p93, %p94
      %p96 = scmp.ne.s32.totalorder %s88, %s91
      %p97 = scmp.eq.s32.totalorder %s10, 0
      %p98 = por %p96, %p97
      %p99 = scmp.ne.s32.totalorder %s88, %s91
      %p100 = scmp.eq.s32.totalorder %s15, 1
      %p101 = por %p99, %p100
      %p102 = scmp.ne.s32.totalorder %s91, %s92
      %p103 = scmp.eq.s32.totalorder %s15, 0
      %p104 = por %p102, %p103
      %p105 = scmp.ne.s32.totalorder %s91, %s92
      %p106 = scmp.eq.s32.totalorder %s16, 1
      %p107 = por %p105, %p106
      %p109 = scmp.ne.s32.totalorder %s92, %s108
      %p110 = scmp.eq.s32.totalorder %s16, 0
      %p111 = por %p109, %p110
      %p112 = scmp.le.s32.totalorder 1, %s10
      %p113 = scmp.lt.s32.totalorder %s10, 3
      %p114 = pnand %p112, %p113
      %p115 = pneg %p114
      // Predicated region
      $region9: #{decoder_block.14} parent=5 // pred_check
        _
      $region10: #{decoder_block.14} parent=5 // pred_check_branch
        %117 = sbr.rel (%p114) target = $region12
      $region11: #{decoder_block.14} parent=5 // pred_region
        %s118 = ssub.s32 %s10, 1
        // Predicated region
        $region13: #{decoder_block.14} parent=11 // pred_check
          %p119 = pneg %p57
        $region14: #{decoder_block.14} parent=11 // pred_check_branch
          %121 = sbr.rel (%p119) target = $region16
        $region15: #{decoder_block.14} parent=11 // pred_region
          %s123 = ssub.s32 2048, 2048
          %124 = vsyncadd [#allocation3], %s123
          %s125 = sshll.u32 [#allocation2], 4
          %s126 = int_to_ptr.vmem [resolvable:$true] %s125
          %131 = dma.hbm_to_vmem [thread:$0]  %s1, 2048, %s126, [#allocation3], 128, 128, 8
        $region16: #{decoder_block.14} parent=11 // pred_fallthru
          _
        // Predicated region
        $region17: #{decoder_block.14} parent=11 // pred_check
          %p132 = pneg %p78
        $region18: #{decoder_block.14} parent=11 // pred_check_branch
          %134 = sbr.rel (%p132) target = $region20
        $region19: #{decoder_block.14} parent=11 // pred_region
          _
        $region20: #{decoder_block.14} parent=11 // pred_fallthru
          _
      $region12: #{decoder_block.14} parent=5 // pred_fallthru
        _
      %p135 = scmp.lt.s32.totalorder %s10, 2
      // Predicated region
      $region21: #{decoder_block.14} parent=5 // pred_check
        %p136 = pneg %p135
      $region22: #{decoder_block.14} parent=5 // pred_check_branch
        %138 = sbr.rel (%p136) target = $region24
      $region23: #{decoder_block.14} parent=5 // pred_region
        // Predicated region
        $region25: #{decoder_block.14} parent=23 // pred_check
          %p139 = pneg %p30
        $region26: #{decoder_block.14} parent=23 // pred_check_branch
          %141 = sbr.rel (%p139) target = $region28
        $region27: #{decoder_block.14} parent=23 // pred_region
          %p142 = scmp.lt.s32.totalorder %s10, 1
          %s143 = scalar_select %p142, %s10, 1
          %s144 = smul.addr %s143, 8
          %s145 = scalar_lea.vmem %s0, %s144
        $region28: #{decoder_block.14} parent=23 // pred_fallthru
          _
      $region24: #{decoder_block.14} parent=5 // pred_fallthru
        _
      %p146 = scmp.le.s32.totalorder 1, %s10
      %p147 = scmp.lt.s32.totalorder %s10, 3
      %p148 = pnand %p146, %p147
      %p149 = pneg %p148
      // Predicated region
      $region29: #{decoder_block.14} parent=5 // pred_check
        _
      $region30: #{decoder_block.14} parent=5 // pred_check_branch
        %151 = sbr.rel (%p148) target = $region32
      $region31: #{decoder_block.14} parent=5 // pred_region
        %s152 = ssub.s32 %s10, 1
        // Predicated region
        $region33: #{decoder_block.14} parent=31 // pred_check
          %p153 = pneg %p57
        $region34: #{decoder_block.14} parent=31 // pred_check_branch
          %155 = sbr.rel (%p153) target = $region36
        $region35: #{decoder_block.14} parent=31 // pred_region
          %156 = dma.done [#allocation3], 2048
        $region36: #{decoder_block.14} parent=31 // pred_fallthru
          _
        %p157 = scmp.lt.s32.totalorder %s15, 1
        %s158 = scalar_select %p157, %s15, 1
        %s159 = smul.addr %s158, 8
        %s160 = scalar_lea.vmem %s0, %s159
        %p161 = pneg %p36
        %p162 = pneg %p33
        %p163 = pneg %p57
        %p164 = pneg %p54
        %p165 = pneg %p78
        %p166 = pneg %p75
        %p167 = pneg %p104
        %p168 = pneg %p101
        %p169 = scmp.lt.s32.totalorder %s15, 1
        %s170 = scalar_select %p169, %s15, 1
        %s171 = smul.addr %s170, 8
        %s172 = scalar_lea.vmem %s3, %s171
        %p173 = scmp.lt.s32.totalorder %s15, 1
        %s174 = scalar_select %p173, %s15, 1
        %s175 = smul.addr %s174, 8
        %s176 = scalar_lea.vmem %s0, %s175
        %p177 = scmp.lt.s32.totalorder %s15, 1
        %s178 = scalar_select %p177, %s15, 1
        %s179 = smul.addr %s178, 8
        %s180 = scalar_lea.vmem %s3, %s179
        %v181 = vld [vmem:[%s176] sm:$0xff]
        %v182 = vld [vmem:[#allocation2] sm:$0xff]
        %v183 = vld [vmem:[#allocation2 + $0x8] sm:$0xff]
        %v184 = vld [vmem:[#allocation2 + $0x10] sm:$0xff]
        %v185 = vld [vmem:[#allocation2 + $0x18] sm:$0xff]
        %v186 = vld [vmem:[#allocation2 + $0x20] sm:$0xff]
        %v187 = vld [vmem:[#allocation2 + $0x28] sm:$0xff]
        %v188 = vld [vmem:[#allocation2 + $0x30] sm:$0xff]
        %v189 = vld [vmem:[#allocation2 + $0x38] sm:$0xff]
        %v190 = vld [vmem:[#allocation2 + $0x40] sm:$0xff]
        %v191 = vld [vmem:[#allocation2 + $0x48] sm:$0xff]
        %v192 = vld [vmem:[#allocation2 + $0x50] sm:$0xff]
        %v193 = vld [vmem:[#allocation2 + $0x58] sm:$0xff]
        %v194 = vld [vmem:[#allocation2 + $0x60] sm:$0xff]
        %v195 = vld [vmem:[#allocation2 + $0x68] sm:$0xff]
        %v196 = vld [vmem:[#allocation2 + $0x70] sm:$0xff]
        %v197 = vld [vmem:[#allocation2 + $0x78] sm:$0xff]
        %v198 = vld [vmem:[%s2] sm:$0x1]
        %v200 = vlaneseq
        %v201 = vshrl.u32 %v200, 7
        %v202 = vsub.s32 0, %v201
        %v203 = vrot.slane %v198, %v202
        %205 = vmatprep.subr.mxu0 0.0
        %206 = vmatpush1.msra.mxu0 %v182
        %207 = vmatprep.subr.mxu0 0.0
        %208 = vmatpush1.msra.mxu0 %v183
        %209 = vmatprep.subr.mxu0 0.0
        %210 = vmatpush1.msra.mxu0 %v184
        %211 = vmatprep.subr.mxu0 0.0
        %212 = vmatpush1.msra.mxu0 %v185
        %213 = vmatprep.subr.mxu0 0.0
        %214 = vmatpush1.msra.mxu0 %v186
        %215 = vmatprep.subr.mxu0 0.0
        %216 = vmatpush1.msra.mxu0 %v187
        %217 = vmatprep.subr.mxu0 0.0
        %218 = vmatpush1.msra.mxu0 %v188
        %219 = vmatprep.subr.mxu0 0.0
        %220 = vmatpush1.msra.mxu0 %v189
        %221 = vmatprep.subr.mxu0 0.0
        %222 = vmatpush1.msra.mxu0 %v190
        %223 = vmatprep.subr.mxu0 0.0
        %224 = vmatpush1.msra.mxu0 %v191
        %225 = vmatprep.subr.mxu0 0.0
        %226 = vmatpush1.msra.mxu0 %v192
        %227 = vmatprep.subr.mxu0 0.0
        %228 = vmatpush1.msra.mxu0 %v193
        %229 = vmatprep.subr.mxu0 0.0
        %230 = vmatpush1.msra.mxu0 %v194
        %231 = vmatprep.subr.mxu0 0.0
        %232 = vmatpush1.msra.mxu0 %v195
        %233 = vmatprep.subr.mxu0 0.0
        %234 = vmatpush1.msra.mxu0 %v196
        %235 = vmatprep.subr.mxu0 0.0
        %236 = vmatpush1.msra.mxu0 %v197
        %237 = vmatprep.subr.mxu0 0.0
        %238 = vmatpush1.msra.mxu0 0.0
        %239 = vmatprep.subr.mxu0 0.0
        %240 = vmatpush1.msra.mxu0 0.0
        %241 = vmatprep.subr.mxu0 0.0
        %242 = vmatpush1.msra.mxu0 0.0
        %243 = vmatprep.subr.mxu0 0.0
        %244 = vmatpush1.msra.mxu0 0.0
        %245 = vmatprep.subr.mxu0 0.0
        %246 = vmatpush1.msra.mxu0 0.0
        %247 = vmatprep.subr.mxu0 0.0
        %248 = vmatpush1.msra.mxu0 0.0
        %249 = vmatprep.subr.mxu0 0.0
        %250 = vmatpush1.msra.mxu0 0.0
        %251 = vmatprep.subr.mxu0 0.0
        %252 = vmatpush1.msra.mxu0 0.0
        %253 = vmatprep.subr.mxu0 0.0
        %254 = vmatpush1.msra.mxu0 0.0
        %255 = vmatprep.subr.mxu0 0.0
        %256 = vmatpush1.msra.mxu0 0.0
        %257 = vmatprep.subr.mxu0 0.0
        %258 = vmatpush1.msra.mxu0 0.0
        %259 = vmatprep.subr.mxu0 0.0
        %260 = vmatpush1.msra.mxu0 0.0
        %261 = vmatprep.subr.mxu0 0.0
        %262 = vmatpush1.msra.mxu0 0.0
        %263 = vmatprep.subr.mxu0 0.0
        %264 = vmatpush1.msra.mxu0 0.0
        %265 = vmatprep.subr.mxu0 0.0
        %266 = vmatpush1.msra.mxu0 0.0
        %267 = vmatprep.subr.mxu0 0.0
        %268 = vmatpush1.msra.mxu0 0.0
        %269 = vmatprep.mubr.f32.mxu0 0.0
        %270 = vmatmul.mubr.f32.gmra.mrb[0].mxu0 %v181
        %v271 = vpop.f32.mrb[0].mxu0
        %v272 = vadd.f32 %v203, %v271
        %v273 = vpop.f32.mrb[0].mxu0
        %274 = vdwg.mxu0
        %275 = vst [vmem:[%s180] sm:$0xff] %v272
        %p276 = scmp.lt.s32.totalorder %s15, 1
        %s277 = scalar_select %p276, %s15, 1
        %s278 = smul.addr %s277, 8
        %s279 = scalar_lea.vmem %s3, %s278
        // Predicated region
        $region37: #{decoder_block.14} parent=31 // pred_check
          %p280 = pneg %p101
        $region38: #{decoder_block.14} parent=31 // pred_check_branch
          %282 = sbr.rel (%p280) target = $region40
        $region39: #{decoder_block.14} parent=31 // pred_region
          _
        $region40: #{decoder_block.14} parent=31 // pred_fallthru
          _
      $region32: #{decoder_block.14} parent=5 // pred_fallthru
        _
      %p283 = scmp.le.s32.totalorder 2, %s10
      // Predicated region
      $region41: #{decoder_block.14} parent=5 // pred_check
        %p284 = pneg %p283
      $region42: #{decoder_block.14} parent=5 // pred_check_branch
        %286 = sbr.rel (%p284) target = $region44
      $region43: #{decoder_block.14} parent=5 // pred_region
        %s287 = ssub.s32 %s10, 2
        // Predicated region
        $region45: #{decoder_block.14} parent=43 // pred_check
          %p288 = pneg %p107
        $region46: #{decoder_block.14} parent=43 // pred_check_branch
          %290 = sbr.rel (%p288) target = $region48
        $region47: #{decoder_block.14} parent=43 // pred_region
          %p291 = scmp.lt.s32.totalorder %s16, 1
          %s292 = scalar_select %p291, %s16, 1
          %s293 = smul.addr %s292, 8
          %s294 = scalar_lea.vmem %s3, %s293
        $region48: #{decoder_block.14} parent=43 // pred_fallthru
          _
      $region44: #{decoder_block.14} parent=5 // pred_fallthru
        _
    $region6: #{decoder_block.14} parent=1 // loop_footer
      %s14 = sadd.s32 1, %s10
    $region7: #{decoder_block.14} parent=1 // loop_footer_branch
      %9 = sbr.rel target = $region3
    $region8: #{decoder_block.14} parent=1 // loop_exit
      _
    %295 = vsyncpa [#allocation3], 1
    %s296 = scalar_lea.sflag [#allocation3], 1
    %297 = vsyncpa %s296, 1

// kernel: decoder_block.15
$region0: #{decoder_block.15}
  #allocation0 [shape = 'u32[]', space=smem, size = 0x4, offset = 0x4, fixed_abs, tag = 'smem constant byte address 0x4 - core index']
  #allocation1 [shape = 'u32[144,128]{1,0:T(1,128)}', space=vmem, size = 0x12000, scoped, tag = 'internal scratch']
  %s0 = inlined_call_operand.vmem [shape: f32[16,128], index: 0, kind: input, shape index: {}]
  %s1 = inlined_call_operand.vmem [shape: f32[128,128], index: 1, kind: input, shape index: {}]
  %s2 = inlined_call_operand.vmem [shape: f32[1,128], index: 2, kind: input, shape index: {}]
  %s3 = inlined_call_operand.vmem [shape: f32[16,128], index: 3, kind: output, shape index: {}]
  %s4 = sld [smem:[#allocation0]]
  $region45: #{decoder_block.15} parent=0
    _
  %s6 = ssub.s32 1, %s4
  %s7 = scalar_select 0, %s6, %s4
  loop: start=0, step=1, limit=4
  $region2: #{decoder_block.15} parent=0 // loop_pre_header
    _
  $region3: #{decoder_block.15} parent=0 // loop_header
    %s9 = sphi 0, %s13
    %p10 = scmp.ge.s32.totalorder %s9, 4
    %s19 = sphi 0, %s21
    %s22 = sphi 0, %s19
    %s23 = sphi 0, %s22
    %s39 = sphi 0, %s23
    %s43 = sphi 0, %s43
    %s45 = sphi 0, %s43
    %s46 = sphi 0, %s45
    %s60 = sphi 0, %s46
    %s64 = sphi 0, %s64
    %s66 = sphi 0, %s64
    %s67 = sphi 0, %s66
    %s81 = sphi 0, %s67
    %s87 = sphi 0, %s89
    %s90 = sphi 0, %s87
    %s91 = sphi 0, %s90
    %s107 = sphi 0, %s91
  $region4: #{decoder_block.15} parent=0 // loop_header_branch
    %12 = sbr.rel (%p10) target = $region8
  $region5: #{decoder_block.15} parent=0 // loop_body
    %s14 = ssub.s32 %s9, 1
    %s15 = ssub.s32 %s9, 2
    %s16 = sadd.s32 %s9, 1
    %s17 = ssub.s32 %s9, %s16
    %p18 = scmp.eq.s32.totalorder %s17, 0
    %s20 = sadd.s32 %s19, 1
    %s21 = scalar_select %p18, %s19, %s20
    %p24 = pneg %p18
    %p25 = scmp.eq.s32.totalorder %s9, 1
    %p26 = por %p24, %p25
    %p27 = scmp.ne.s32.totalorder %s19, %s22
    %p28 = scmp.eq.s32.totalorder %s9, 0
    %p29 = por %p27, %p28
    %p30 = scmp.ne.s32.totalorder %s19, %s22
    %p31 = scmp.eq.s32.totalorder %s14, 1
    %p32 = por %p30, %p31
    %p33 = scmp.ne.s32.totalorder %s22, %s23
    %p34 = scmp.eq.s32.totalorder %s14, 0
    %p35 = por %p33, %p34
    %p36 = scmp.ne.s32.totalorder %s22, %s23
    %p37 = scmp.eq.s32.totalorder %s15, 1
    %p38 = por %p36, %p37
    %p40 = scmp.ne.s32.totalorder %s23, %s39
    %p41 = scmp.eq.s32.totalorder %s15, 0
    %p42 = por %p40, %p41
    %s44 = sadd.s32 %s43, 1
    %p47 = scmp.eq.s32.totalorder %s9, 1
    %p48 = scmp.ne.s32.totalorder %s43, %s45
    %p49 = scmp.eq.s32.totalorder %s9, 0
    %p50 = por %p48, %p49
    %p51 = scmp.ne.s32.totalorder %s43, %s45
    %p52 = scmp.eq.s32.totalorder %s14, 1
    %p53 = por %p51, %p52
    %p54 = scmp.ne.s32.totalorder %s45, %s46
    %p55 = scmp.eq.s32.totalorder %s14, 0
    %p56 = por %p54, %p55
    %p57 = scmp.ne.s32.totalorder %s45, %s46
    %p58 = scmp.eq.s32.totalorder %s15, 1
    %p59 = por %p57, %p58
    %p61 = scmp.ne.s32.totalorder %s46, %s60
    %p62 = scmp.eq.s32.totalorder %s15, 0
    %p63 = por %p61, %p62
    %s65 = sadd.s32 %s64, 1
    %p68 = scmp.eq.s32.totalorder %s9, 1
    %p69 = scmp.ne.s32.totalorder %s64, %s66
    %p70 = scmp.eq.s32.totalorder %s9, 0
    %p71 = por %p69, %p70
    %p72 = scmp.ne.s32.totalorder %s64, %s66
    %p73 = scmp.eq.s32.totalorder %s14, 1
    %p74 = por %p72, %p73
    %p75 = scmp.ne.s32.totalorder %s66, %s67
    %p76 = scmp.eq.s32.totalorder %s14, 0
    %p77 = por %p75, %p76
    %p78 = scmp.ne.s32.totalorder %s66, %s67
    %p79 = scmp.eq.s32.totalorder %s15, 1
    %p80 = por %p78, %p79
    %p82 = scmp.ne.s32.totalorder %s67, %s81
    %p83 = scmp.eq.s32.totalorder %s15, 0
    %p84 = por %p82, %p83
    %s85 = ssub.s32 %s9, %s16
    %p86 = scmp.eq.s32.totalorder %s85, 0
    %s88 = sadd.s32 %s87, 1
    %s89 = scalar_select %p86, %s87, %s88
    %p92 = pneg %p86
    %p93 = scmp.eq.s32.totalorder %s9, 1
    %p94 = por %p92, %p93
    %p95 = scmp.ne.s32.totalorder %s87, %s90
    %p96 = scmp.eq.s32.totalorder %s9, 0
    %p97 = por %p95, %p96
    %p98 = scmp.ne.s32.totalorder %s87, %s90
    %p99 = scmp.eq.s32.totalorder %s14, 1
    %p100 = por %p98, %p99
    %p101 = scmp.ne.s32.totalorder %s90, %s91
    %p102 = scmp.eq.s32.totalorder %s14, 0
    %p103 = por %p101, %p102
    %p104 = scmp.ne.s32.totalorder %s90, %s91
    %p105 = scmp.eq.s32.totalorder %s15, 1
    %p106 = por %p104, %p105
    %p108 = scmp.ne.s32.totalorder %s91, %s107
    %p109 = scmp.eq.s32.totalorder %s15, 0
    %p110 = por %p108, %p109
    %p111 = scmp.le.s32.totalorder 1, %s9
    %p112 = scmp.lt.s32.totalorder %s9, 3
    %p113 = pnand %p111, %p112
    %p114 = pneg %p113
    // Predicated region
    $region9: #{decoder_block.15} parent=5 // pred_check
      _
    $region10: #{decoder_block.15} parent=5 // pred_check_branch
      %116 = sbr.rel (%p113) target = $region12
    $region11: #{decoder_block.15} parent=5 // pred_region
      %s117 = ssub.s32 %s9, 1
      // Predicated region
      $region13: #{decoder_block.15} parent=11 // pred_check
        %p118 = pneg %p56
      $region14: #{decoder_block.15} parent=11 // pred_check_branch
        %120 = sbr.rel (%p118) target = $region16
      $region15: #{decoder_block.15} parent=11 // pred_region
        _
      $region16: #{decoder_block.15} parent=11 // pred_fallthru
        _
      // Predicated region
      $region17: #{decoder_block.15} parent=11 // pred_check
        %p121 = pneg %p77
      $region18: #{decoder_block.15} parent=11 // pred_check_branch
        %123 = sbr.rel (%p121) target = $region20
      $region19: #{decoder_block.15} parent=11 // pred_region
        _
      $region20: #{decoder_block.15} parent=11 // pred_fallthru
        _
    $region12: #{decoder_block.15} parent=5 // pred_fallthru
      _
    %p124 = scmp.lt.s32.totalorder %s9, 2
    // Predicated region
    $region21: #{decoder_block.15} parent=5 // pred_check
      %p125 = pneg %p124
    $region22: #{decoder_block.15} parent=5 // pred_check_branch
      %127 = sbr.rel (%p125) target = $region24
    $region23: #{decoder_block.15} parent=5 // pred_region
      // Predicated region
      $region25: #{decoder_block.15} parent=23 // pred_check
        %p128 = pneg %p29
      $region26: #{decoder_block.15} parent=23 // pred_check_branch
        %130 = sbr.rel (%p128) target = $region28
      $region27: #{decoder_block.15} parent=23 // pred_region
        %p131 = scmp.lt.s32.totalorder %s9, 1
        %s132 = scalar_select %p131, %s9, 1
        %s133 = smul.addr %s132, 8
        %s134 = scalar_lea.vmem %s0, %s133
      $region28: #{decoder_block.15} parent=23 // pred_fallthru
        _
    $region24: #{decoder_block.15} parent=5 // pred_fallthru
      _
    %p135 = scmp.le.s32.totalorder 1, %s9
    %p136 = scmp.lt.s32.totalorder %s9, 3
    %p137 = pnand %p135, %p136
    %p138 = pneg %p137
    // Predicated region
    $region29: #{decoder_block.15} parent=5 // pred_check
      _
    $region30: #{decoder_block.15} parent=5 // pred_check_branch
      %140 = sbr.rel (%p137) target = $region32
    $region31: #{decoder_block.15} parent=5 // pred_region
      %s141 = ssub.s32 %s9, 1
      %p142 = scmp.lt.s32.totalorder %s14, 1
      %s143 = scalar_select %p142, %s14, 1
      %s144 = smul.addr %s143, 8
      %s145 = scalar_lea.vmem %s0, %s144
      %p146 = pneg %p35
      %p147 = pneg %p32
      %p148 = pneg %p56
      %p149 = pneg %p53
      %p150 = pneg %p77
      %p151 = pneg %p74
      %p152 = pneg %p103
      %p153 = pneg %p100
      %p154 = scmp.lt.s32.totalorder %s14, 1
      %s155 = scalar_select %p154, %s14, 1
      %s156 = smul.addr %s155, 8
      %s157 = scalar_lea.vmem %s3, %s156
      %p158 = scmp.lt.s32.totalorder %s14, 1
      %s159 = scalar_select %p158, %s14, 1
      %s160 = smul.addr %s159, 8
      %s161 = scalar_lea.vmem %s0, %s160
      %p162 = scmp.lt.s32.totalorder %s14, 1
      %s163 = scalar_select %p162, %s14, 1
      %s164 = smul.addr %s163, 8
      %s165 = scalar_lea.vmem %s3, %s164
      %v166 = vld [vmem:[%s161] sm:$0xff]
      %v167 = vld [vmem:[%s1] sm:$0xff]
      %v168 = vld [vmem:[%s1 + $0x8] sm:$0xff]
      %v169 = vld [vmem:[%s1 + $0x10] sm:$0xff]
      %v170 = vld [vmem:[%s1 + $0x18] sm:$0xff]
      %v171 = vld [vmem:[%s1 + $0x20] sm:$0xff]
      %v172 = vld [vmem:[%s1 + $0x28] sm:$0xff]
      %v173 = vld [vmem:[%s1 + $0x30] sm:$0xff]
      %v174 = vld [vmem:[%s1 + $0x38] sm:$0xff]
      %v175 = vld [vmem:[%s1 + $0x40] sm:$0xff]
      %v176 = vld [vmem:[%s1 + $0x48] sm:$0xff]
      %v177 = vld [vmem:[%s1 + $0x50] sm:$0xff]
      %v178 = vld [vmem:[%s1 + $0x58] sm:$0xff]
      %v179 = vld [vmem:[%s1 + $0x60] sm:$0xff]
      %v180 = vld [vmem:[%s1 + $0x68] sm:$0xff]
      %v181 = vld [vmem:[%s1 + $0x70] sm:$0xff]
      %v182 = vld [vmem:[%s1 + $0x78] sm:$0xff]
      %v183 = vld [vmem:[%s2] sm:$0x1]
      %v185 = vlaneseq
      %v186 = vshrl.u32 %v185, 7
      %v187 = vsub.s32 0, %v186
      %v188 = vrot.slane %v183, %v187
      %190 = vmatprep.subr.mxu0 0.0
      %191 = vmatpush1.msra.mxu0 %v167
      %192 = vmatprep.subr.mxu0 0.0
      %193 = vmatpush1.msra.mxu0 %v168
      %194 = vmatprep.subr.mxu0 0.0
      %195 = vmatpush1.msra.mxu0 %v169
      %196 = vmatprep.subr.mxu0 0.0
      %197 = vmatpush1.msra.mxu0 %v170
      %198 = vmatprep.subr.mxu0 0.0
      %199 = vmatpush1.msra.mxu0 %v171
      %200 = vmatprep.subr.mxu0 0.0
      %201 = vmatpush1.msra.mxu0 %v172
      %202 = vmatprep.subr.mxu0 0.0
      %203 = vmatpush1.msra.mxu0 %v173
      %204 = vmatprep.subr.mxu0 0.0
      %205 = vmatpush1.msra.mxu0 %v174
      %206 = vmatprep.subr.mxu0 0.0
      %207 = vmatpush1.msra.mxu0 %v175
      %208 = vmatprep.subr.mxu0 0.0
      %209 = vmatpush1.msra.mxu0 %v176
      %210 = vmatprep.subr.mxu0 0.0
      %211 = vmatpush1.msra.mxu0 %v177
      %212 = vmatprep.subr.mxu0 0.0
      %213 = vmatpush1.msra.mxu0 %v178
      %214 = vmatprep.subr.mxu0 0.0
      %215 = vmatpush1.msra.mxu0 %v179
      %216 = vmatprep.subr.mxu0 0.0
      %217 = vmatpush1.msra.mxu0 %v180
      %218 = vmatprep.subr.mxu0 0.0
      %219 = vmatpush1.msra.mxu0 %v181
      %220 = vmatprep.subr.mxu0 0.0
      %221 = vmatpush1.msra.mxu0 %v182
      %222 = vmatprep.subr.mxu0 0.0
      %223 = vmatpush1.msra.mxu0 0.0
      %224 = vmatprep.subr.mxu0 0.0
      %225 = vmatpush1.msra.mxu0 0.0
      %226 = vmatprep.subr.mxu0 0.0
      %227 = vmatpush1.msra.mxu0 0.0
      %228 = vmatprep.subr.mxu0 0.0
      %229 = vmatpush1.msra.mxu0 0.0
      %230 = vmatprep.subr.mxu0 0.0
      %231 = vmatpush1.msra.mxu0 0.0
      %232 = vmatprep.subr.mxu0 0.0
      %233 = vmatpush1.msra.mxu0 0.0
      %234 = vmatprep.subr.mxu0 0.0
      %235 = vmatpush1.msra.mxu0 0.0
      %236 = vmatprep.subr.mxu0 0.0
      %237 = vmatpush1.msra.mxu0 0.0
      %238 = vmatprep.subr.mxu0 0.0
      %239 = vmatpush1.msra.mxu0 0.0
      %240 = vmatprep.subr.mxu0 0.0
      %241 = vmatpush1.msra.mxu0 0.0
      %242 = vmatprep.subr.mxu0 0.0
      %243 = vmatpush1.msra.mxu0 0.0
      %244 = vmatprep.subr.mxu0 0.0
      %245 = vmatpush1.msra.mxu0 0.0
      %246 = vmatprep.subr.mxu0 0.0
      %247 = vmatpush1.msra.mxu0 0.0
      %248 = vmatprep.subr.mxu0 0.0
      %249 = vmatpush1.msra.mxu0 0.0
      %250 = vmatprep.subr.mxu0 0.0
      %251 = vmatpush1.msra.mxu0 0.0
      %252 = vmatprep.subr.mxu0 0.0
      %253 = vmatpush1.msra.mxu0 0.0
      %254 = vmatprep.mubr.f32.mxu0 0.0
      %255 = vmatmul.mubr.f32.gmra.mrb[0].mxu0 %v166
      %v256 = vpop.f32.mrb[0].mxu0
      %v257 = vadd.f32 %v188, %v256
      %v258 = vpop.f32.mrb[0].mxu0
      %259 = vdwg.mxu0
      %260 = vst [vmem:[%s165] sm:$0xff] %v257
      %p261 = scmp.lt.s32.totalorder %s14, 1
      %s262 = scalar_select %p261, %s14, 1
      %s263 = smul.addr %s262, 8
      %s264 = scalar_lea.vmem %s3, %s263
      // Predicated region
      $region33: #{decoder_block.15} parent=31 // pred_check
        %p265 = pneg %p100
      $region34: #{decoder_block.15} parent=31 // pred_check_branch
        %267 = sbr.rel (%p265) target = $region36
      $region35: #{decoder_block.15} parent=31 // pred_region
        _
      $region36: #{decoder_block.15} parent=31 // pred_fallthru
        _
    $region32: #{decoder_block.15} parent=5 // pred_fallthru
      _
    %p268 = scmp.le.s32.totalorder 2, %s9
    // Predicated region
    $region37: #{decoder_block.15} parent=5 // pred_check
      %p269 = pneg %p268
    $region38: #{decoder_block.15} parent=5 // pred_check_branch
      %271 = sbr.rel (%p269) target = $region40
    $region39: #{decoder_block.15} parent=5 // pred_region
      %s272 = ssub.s32 %s9, 2
      // Predicated region
      $region41: #{decoder_block.15} parent=39 // pred_check
        %p273 = pneg %p106
      $region42: #{decoder_block.15} parent=39 // pred_check_branch
        %275 = sbr.rel (%p273) target = $region44
      $region43: #{decoder_block.15} parent=39 // pred_region
        %p276 = scmp.lt.s32.totalorder %s15, 1
        %s277 = scalar_select %p276, %s15, 1
        %s278 = smul.addr %s277, 8
        %s279 = scalar_lea.vmem %s3, %s278
      $region44: #{decoder_block.15} parent=39 // pred_fallthru
        _
    $region40: #{decoder_block.15} parent=5 // pred_fallthru
      _
  $region6: #{decoder_block.15} parent=0 // loop_footer
    %s13 = sadd.s32 1, %s9
  $region7: #{decoder_block.15} parent=0 // loop_footer_branch
    %8 = sbr.rel target = $region3
  $region8: #{decoder_block.15} parent=0 // loop_exit
    _

// kernel: decoder_block.17
$region0: #{decoder_block.17}
  #allocation0 [shape = 'u32[]', space=smem, size = 0x4, offset = 0x4, fixed_abs, tag = 'smem constant byte address 0x4 - core index']
  #allocation1 [shape = 'u32[144,128]{1,0:T(1,128)}', space=vmem, size = 0x12000, scoped, tag = 'internal scratch']
  #allocation2 [shape = 's32[1]{0}', space=sflag, size = 0x4, scoped, tag = 'scoped memory for decoder_block.17']
  #allocation3 [shape = 'u8[512]{0}', space=smem, size = 0x200, scoped, tag = 'prefetched SMEM operand 0']
  %s0 = inlined_call_operand.vmem [shape: s32[8], index: 0, kind: input, shape index: {}]
  %s1 = inlined_call_operand.vmem [shape: f32[8,8,32], index: 1, kind: input, shape index: {}]
  %s2 = inlined_call_operand.vmem [shape: f32[8,8,32], index: 2, kind: input, shape index: {}]
  %s3 = inlined_call_operand.vmem [shape: f32[8,8,32], index: 3, kind: input, shape index: {}]
  %s4 = inlined_call_operand.vmem [shape: f32[8,8,32], index: 4, kind: output, shape index: {}]
  %s5 = sld [smem:[#allocation0]]
  $region45: #{decoder_block.17} parent=0
    _
  %s7 = ssub.s32 1, %s5
  %s8 = scalar_select 0, %s7, %s5
  %s9 = sshll.u32 %s0, 4
  %s10 = int_to_ptr.vmem [resolvable:$true] %s9
  %12 = dma.vmem_to_smem %s10, 16, [#allocation3], [#allocation2]
  %13 = dma.done [#allocation2], 16
  %14 = sfence
  loop: start=0, step=1, limit=10
  $region2: #{decoder_block.17} parent=0 // loop_pre_header
    _
  $region3: #{decoder_block.17} parent=0 // loop_header
    %s16 = sphi 0, %s20
    %p17 = scmp.ge.s32.totalorder %s16, 10
    %s26 = sphi 0, %s28
    %s29 = sphi 0, %s26
    %s30 = sphi 0, %s29
    %s46 = sphi 0, %s30
    %s52 = sphi 0, %s54
    %s55 = sphi 0, %s52
    %s56 = sphi 0, %s55
    %s72 = sphi 0, %s56
    %s78 = sphi 0, %s80
    %s81 = sphi 0, %s78
    %s82 = sphi 0, %s81
    %s98 = sphi 0, %s82
    %s104 = sphi 0, %s106
    %s107 = sphi 0, %s104
    %s108 = sphi 0, %s107
    %s124 = sphi 0, %s108
  $region4: #{decoder_block.17} parent=0 // loop_header_branch
    %19 = sbr.rel (%p17) target = $region8
  $region5: #{decoder_block.17} parent=0 // loop_body
    %s21 = ssub.s32 %s16, 1
    %s22 = ssub.s32 %s16, 2
    %s23 = sadd.s32 %s16, 1
    %s24 = ssub.s32 %s16, %s23
    %p25 = scmp.eq.s32.totalorder %s24, 0
    %s27 = sadd.s32 %s26, 1
    %s28 = scalar_select %p25, %s26, %s27
    %p31 = pneg %p25
    %p32 = scmp.eq.s32.totalorder %s16, 7
    %p33 = por %p31, %p32
    %p34 = scmp.ne.s32.totalorder %s26, %s29
    %p35 = scmp.eq.s32.totalorder %s16, 0
    %p36 = por %p34, %p35
    %p37 = scmp.ne.s32.totalorder %s26, %s29
    %p38 = scmp.eq.s32.totalorder %s21, 7
    %p39 = por %p37, %p38
    %p40 = scmp.ne.s32.totalorder %s29, %s30
    %p41 = scmp.eq.s32.totalorder %s21, 0
    %p42 = por %p40, %p41
    %p43 = scmp.ne.s32.totalorder %s29, %s30
    %p44 = scmp.eq.s32.totalorder %s22, 7
    %p45 = por %p43, %p44
    %p47 = scmp.ne.s32.totalorder %s30, %s46
    %p48 = scmp.eq.s32.totalorder %s22, 0
    %p49 = por %p47, %p48
    %s50 = ssub.s32 %s16, %s23
    %p51 = scmp.eq.s32.totalorder %s50, 0
    %s53 = sadd.s32 %s52, 1
    %s54 = scalar_select %p51, %s52, %s53
    %p57 = pneg %p51
    %p58 = scmp.eq.s32.totalorder %s16, 7
    %p59 = por %p57, %p58
    %p60 = scmp.ne.s32.totalorder %s52, %s55
    %p61 = scmp.eq.s32.totalorder %s16, 0
    %p62 = por %p60, %p61
    %p63 = scmp.ne.s32.totalorder %s52, %s55
    %p64 = scmp.eq.s32.totalorder %s21, 7
    %p65 = por %p63, %p64
    %p66 = scmp.ne.s32.totalorder %s55, %s56
    %p67 = scmp.eq.s32.totalorder %s21, 0
    %p68 = por %p66, %p67
    %p69 = scmp.ne.s32.totalorder %s55, %s56
    %p70 = scmp.eq.s32.totalorder %s22, 7
    %p71 = por %p69, %p70
    %p73 = scmp.ne.s32.totalorder %s56, %s72
    %p74 = scmp.eq.s32.totalorder %s22, 0
    %p75 = por %p73, %p74
    %s76 = ssub.s32 %s16, %s23
    %p77 = scmp.eq.s32.totalorder %s76, 0
    %s79 = sadd.s32 %s78, 1
    %s80 = scalar_select %p77, %s78, %s79
    %p83 = pneg %p77
    %p84 = scmp.eq.s32.totalorder %s16, 7
    %p85 = por %p83, %p84
    %p86 = scmp.ne.s32.totalorder %s78, %s81
    %p87 = scmp.eq.s32.totalorder %s16, 0
    %p88 = por %p86, %p87
    %p89 = scmp.ne.s32.totalorder %s78, %s81
    %p90 = scmp.eq.s32.totalorder %s21, 7
    %p91 = por %p89, %p90
    %p92 = scmp.ne.s32.totalorder %s81, %s82
    %p93 = scmp.eq.s32.totalorder %s21, 0
    %p94 = por %p92, %p93
    %p95 = scmp.ne.s32.totalorder %s81, %s82
    %p96 = scmp.eq.s32.totalorder %s22, 7
    %p97 = por %p95, %p96
    %p99 = scmp.ne.s32.totalorder %s82, %s98
    %p100 = scmp.eq.s32.totalorder %s22, 0
    %p101 = por %p99, %p100
    %s102 = ssub.s32 %s16, %s23
    %p103 = scmp.eq.s32.totalorder %s102, 0
    %s105 = sadd.s32 %s104, 1
    %s106 = scalar_select %p103, %s104, %s105
    %p109 = pneg %p103
    %p110 = scmp.eq.s32.totalorder %s16, 7
    %p111 = por %p109, %p110
    %p112 = scmp.ne.s32.totalorder %s104, %s107
    %p113 = scmp.eq.s32.totalorder %s16, 0
    %p114 = por %p112, %p113
    %p115 = scmp.ne.s32.totalorder %s104, %s107
    %p116 = scmp.eq.s32.totalorder %s21, 7
    %p117 = por %p115, %p116
    %p118 = scmp.ne.s32.totalorder %s107, %s108
    %p119 = scmp.eq.s32.totalorder %s21, 0
    %p120 = por %p118, %p119
    %p121 = scmp.ne.s32.totalorder %s107, %s108
    %p122 = scmp.eq.s32.totalorder %s22, 7
    %p123 = por %p121, %p122
    %p125 = scmp.ne.s32.totalorder %s108, %s124
    %p126 = scmp.eq.s32.totalorder %s22, 0
    %p127 = por %p125, %p126
    %p128 = scmp.le.s32.totalorder 1, %s16
    %p129 = scmp.lt.s32.totalorder %s16, 9
    %p130 = pnand %p128, %p129
    %p131 = pneg %p130
    // Predicated region
    $region9: #{decoder_block.17} parent=5 // pred_check
      _
    $region10: #{decoder_block.17} parent=5 // pred_check_branch
      %133 = sbr.rel (%p130) target = $region12
    $region11: #{decoder_block.17} parent=5 // pred_region
      %s134 = ssub.s32 %s16, 1
    $region12: #{decoder_block.17} parent=5 // pred_fallthru
      _
    %p135 = scmp.lt.s32.totalorder %s16, 8
    // Predicated region
    $region13: #{decoder_block.17} parent=5 // pred_check
      %p136 = pneg %p135
    $region14: #{decoder_block.17} parent=5 // pred_check_branch
      %138 = sbr.rel (%p136) target = $region16
    $region15: #{decoder_block.17} parent=5 // pred_region
      // Predicated region
      $region17: #{decoder_block.17} parent=15 // pred_check
        %p139 = pneg %p36
      $region18: #{decoder_block.17} parent=15 // pred_check_branch
        %141 = sbr.rel (%p139) target = $region20
      $region19: #{decoder_block.17} parent=15 // pred_region
        %p142 = scmp.lt.s32.totalorder %s16, 7
        %s143 = scalar_select %p142, %s16, 7
        %s144 = smul.addr %s143, 8
        %s145 = scalar_lea.vmem %s1, %s144
      $region20: #{decoder_block.17} parent=15 // pred_fallthru
        _
      // Predicated region
      $region21: #{decoder_block.17} parent=15 // pred_check
        %p146 = pneg %p62
      $region22: #{decoder_block.17} parent=15 // pred_check_branch
        %148 = sbr.rel (%p146) target = $region24
      $region23: #{decoder_block.17} parent=15 // pred_region
        %p149 = scmp.lt.s32.totalorder %s16, 7
        %s150 = scalar_select %p149, %s16, 7
        %s151 = smul.addr %s150, 8
        %s152 = scalar_lea.vmem %s2, %s151
      $region24: #{decoder_block.17} parent=15 // pred_fallthru
        _
      // Predicated region
      $region25: #{decoder_block.17} parent=15 // pred_check
        %p153 = pneg %p88
      $region26: #{decoder_block.17} parent=15 // pred_check_branch
        %155 = sbr.rel (%p153) target = $region28
      $region27: #{decoder_block.17} parent=15 // pred_region
        %p156 = scmp.lt.s32.totalorder %s16, 7
        %s157 = scalar_select %p156, %s16, 7
        %s158 = smul.addr %s157, 8
        %s159 = scalar_lea.vmem %s3, %s158
      $region28: #{decoder_block.17} parent=15 // pred_fallthru
        _
    $region16: #{decoder_block.17} parent=5 // pred_fallthru
      _
    %p160 = scmp.le.s32.totalorder 1, %s16
    %p161 = scmp.lt.s32.totalorder %s16, 9
    %p162 = pnand %p160, %p161
    %p163 = pneg %p162
    // Predicated region
    $region29: #{decoder_block.17} parent=5 // pred_check
      _
    $region30: #{decoder_block.17} parent=5 // pred_check_branch
      %165 = sbr.rel (%p162) target = $region32
    $region31: #{decoder_block.17} parent=5 // pred_region
      %s166 = ssub.s32 %s16, 1
      %p167 = scmp.lt.s32.totalorder %s21, 7
      %s168 = scalar_select %p167, %s21, 7
      %s169 = smul.addr %s168, 8
      %s170 = scalar_lea.vmem %s1, %s169
      %p171 = pneg %p42
      %p172 = pneg %p39
      %p173 = scmp.lt.s32.totalorder %s21, 7
      %s174 = scalar_select %p173, %s21, 7
      %s175 = smul.addr %s174, 8
      %s176 = scalar_lea.vmem %s2, %s175
      %p177 = pneg %p68
      %p178 = pneg %p65
      %p179 = scmp.lt.s32.totalorder %s21, 7
      %s180 = scalar_select %p179, %s21, 7
      %s181 = smul.addr %s180, 8
      %s182 = scalar_lea.vmem %s3, %s181
      %p183 = pneg %p94
      %p184 = pneg %p91
      %p185 = pneg %p120
      %p186 = pneg %p117
      %p187 = scmp.lt.s32.totalorder %s21, 7
      %s188 = scalar_select %p187, %s21, 7
      %s189 = smul.addr %s188, 8
      %s190 = scalar_lea.vmem %s4, %s189
      %p191 = scmp.lt.s32.totalorder %s21, 7
      %s192 = scalar_select %p191, %s21, 7
      %s193 = smul.addr %s192, 8
      %s194 = scalar_lea.vmem %s1, %s193
      %p195 = scmp.lt.s32.totalorder %s21, 7
      %s196 = scalar_select %p195, %s21, 7
      %s197 = smul.addr %s196, 8
      %s198 = scalar_lea.vmem %s2, %s197
      %p199 = scmp.lt.s32.totalorder %s21, 7
      %s200 = scalar_select %p199, %s21, 7
      %s201 = smul.addr %s200, 8
      %s202 = scalar_lea.vmem %s3, %s201
      %p203 = scmp.lt.s32.totalorder %s21, 7
      %s204 = scalar_select %p203, %s21, 7
      %s205 = smul.addr %s204, 8
      %s206 = scalar_lea.vmem %s4, %s205
      %v207 = vld [vmem:[%s194] sm:$0xff]
      %v208 = vld [vmem:[%s198] sm:$0xff]
      %v209 = vld [vmem:[%s202] sm:$0xff]
      %vm210 = vcmask 261120
      %v212 = vsel %vm210, %v207, 0
      %v215 = vsel %vm210, %v208, 0
      %217 = vmatprep.subr.mxu0 0.0
      %218 = vmatpush1.xpose.msra.mxu0 %v215
      %219 = vmatprep.subr.mxu0 0.0
      %220 = vmatpush1.xpose.msra.mxu0 0.0
      %221 = vmatprep.subr.mxu0 0.0
      %222 = vmatpush1.xpose.msra.mxu0 0.0
      %223 = vmatprep.subr.mxu0 0.0
      %224 = vmatpush1.xpose.msra.mxu0 0.0
      %225 = vmatprep.subr.mxu0 0.0
      %226 = vmatpush1.xpose.msra.mxu0 0.0
      %227 = vmatprep.subr.mxu0 0.0
      %228 = vmatpush1.xpose.msra.mxu0 0.0
      %229 = vmatprep.subr.mxu0 0.0
      %230 = vmatpush1.xpose.msra.mxu0 0.0
      %231 = vmatprep.subr.mxu0 0.0
      %232 = vmatpush1.xpose.msra.mxu0 0.0
      %233 = vmatprep.subr.mxu0 0.0
      %234 = vmatpush1.xpose.msra.mxu0 0.0
      %235 = vmatprep.subr.mxu0 0.0
      %236 = vmatpush1.xpose.msra.mxu0 0.0
      %237 = vmatprep.subr.mxu0 0.0
      %238 = vmatpush1.xpose.msra.mxu0 0.0
      %239 = vmatprep.subr.mxu0 0.0
      %240 = vmatpush1.xpose.msra.mxu0 0.0
      %241 = vmatprep.subr.mxu0 0.0
      %242 = vmatpush1.xpose.msra.mxu0 0.0
      %243 = vmatprep.subr.mxu0 0.0
      %244 = vmatpush1.xpose.msra.mxu0 0.0
      %245 = vmatprep.subr.mxu0 0.0
      %246 = vmatpush1.xpose.msra.mxu0 0.0
      %247 = vmatprep.subr.mxu0 0.0
      %248 = vmatpush1.xpose.msra.mxu0 0.0
      %249 = vmatprep.subr.mxu0 0.0
      %250 = vmatpush1.xpose.msra.mxu0 0.0
      %251 = vmatprep.subr.mxu0 0.0
      %252 = vmatpush1.xpose.msra.mxu0 0.0
      %253 = vmatprep.subr.mxu0 0.0
      %254 = vmatpush1.xpose.msra.mxu0 0.0
      %255 = vmatprep.subr.mxu0 0.0
      %256 = vmatpush1.xpose.msra.mxu0 0.0
      %257 = vmatprep.subr.mxu0 0.0
      %258 = vmatpush1.xpose.msra.mxu0 0.0
      %259 = vmatprep.subr.mxu0 0.0
      %260 = vmatpush1.xpose.msra.mxu0 0.0
      %261 = vmatprep.subr.mxu0 0.0
      %262 = vmatpush1.xpose.msra.mxu0 0.0
      %263 = vmatprep.subr.mxu0 0.0
      %264 = vmatpush1.xpose.msra.mxu0 0.0
      %265 = vmatprep.subr.mxu0 0.0
      %266 = vmatpush1.xpose.msra.mxu0 0.0
      %267 = vmatprep.subr.mxu0 0.0
      %268 = vmatpush1.xpose.msra.mxu0 0.0
      %269 = vmatprep.subr.mxu0 0.0
      %270 = vmatpush1.xpose.msra.mxu0 0.0
      %271 = vmatprep.subr.mxu0 0.0
      %272 = vmatpush1.xpose.msra.mxu0 0.0
      %273 = vmatprep.subr.mxu0 0.0
      %274 = vmatpush1.xpose.msra.mxu0 0.0
      %275 = vmatprep.subr.mxu0 0.0
      %276 = vmatpush1.xpose.msra.mxu0 0.0
      %277 = vmatprep.subr.mxu0 0.0
      %278 = vmatpush1.xpose.msra.mxu0 0.0
      %279 = vmatprep.subr.mxu0 0.0
      %280 = vmatpush1.xpose.msra.mxu0 0.0
      %281 = vmatprep.mubr.f32.mxu0 0.0
      %282 = vmatmul.mubr.f32.gmra.mrb[0].mxu0 %v212
      %v283 = vpop.f32.mrb[0].mxu0
      %v284 = vadd.f32 0.0, %v283
      %v285 = vpop.f32.mrb[0].mxu0
      %286 = vdwg.mxu0
      %v287 = vmul.f32 %v284, 0.17677669
      %s288 = sld [smem:[#allocation3 + %s21]]
      %v289 = vlaneseq
      %v290 = vand.u32 %v289, 127
      %v291 = vstv %s288
      %vm292 = vcmp.lt.s32.totalorder %v290, %v291
      %v293 = vsel %vm292, %v287, -1000000.0
      %vm294 = vcmask 64512
      %v295 = vsel %vm294, %v293, -inf
      %296 = vmax.xlane.f32.xlu0 %v295
      %v297 = vpop.xlane.xlu0 %296
      %v298 = vsub.f32 %v293, %v297
      %v299 = vmul.f32 %v298, 1.442695
      %v300 = vpow.pop %v299
      %v301 = vsel %vm294, %v300, 0.0
      %302 = vadd.xlane.f32.xlu0 %v301
      %v303 = vpop.xlane.xlu0 %302
      %v304 = vrcp.pop %v303
      %v305 = vmul.f32 %v300, %v304
      %v307 = vsel %vm294, %v305, 0
      %309 = vmatprep.subr.mxu0 0.0
      %310 = vmatpush1.msra.mxu0 %v209
      %311 = vmatprep.subr.mxu0 0.0
      %312 = vmatpush1.msra.mxu0 0.0
      %313 = vmatprep.subr.mxu0 0.0
      %314 = vmatpush1.msra.mxu0 0.0
      %315 = vmatprep.subr.mxu0 0.0
      %316 = vmatpush1.msra.mxu0 0.0
      %317 = vmatprep.subr.mxu0 0.0
      %318 = vmatpush1.msra.mxu0 0.0
      %319 = vmatprep.subr.mxu0 0.0
      %320 = vmatpush1.msra.mxu0 0.0
      %321 = vmatprep.subr.mxu0 0.0
      %322 = vmatpush1.msra.mxu0 0.0
      %323 = vmatprep.subr.mxu0 0.0
      %324 = vmatpush1.msra.mxu0 0.0
      %325 = vmatprep.subr.mxu0 0.0
      %326 = vmatpush1.msra.mxu0 0.0
      %327 = vmatprep.subr.mxu0 0.0
      %328 = vmatpush1.msra.mxu0 0.0
      %329 = vmatprep.subr.mxu0 0.0
      %330 = vmatpush1.msra.mxu0 0.0
      %331 = vmatprep.subr.mxu0 0.0
      %332 = vmatpush1.msra.mxu0 0.0
      %333 = vmatprep.subr.mxu0 0.0
      %334 = vmatpush1.msra.mxu0 0.0
      %335 = vmatprep.subr.mxu0 0.0
      %336 = vmatpush1.msra.mxu0 0.0
      %337 = vmatprep.subr.mxu0 0.0
      %338 = vmatpush1.msra.mxu0 0.0
      %339 = vmatprep.subr.mxu0 0.0
      %340 = vmatpush1.msra.mxu0 0.0
      %341 = vmatprep.subr.mxu0 0.0
      %342 = vmatpush1.msra.mxu0 0.0
      %343 = vmatprep.subr.mxu0 0.0
      %344 = vmatpush1.msra.mxu0 0.0
      %345 = vmatprep.subr.mxu0 0.0
      %346 = vmatpush1.msra.mxu0 0.0
      %347 = vmatprep.subr.mxu0 0.0
      %348 = vmatpush1.msra.mxu0 0.0
      %349 = vmatprep.subr.mxu0 0.0
      %350 = vmatpush1.msra.mxu0 0.0
      %351 = vmatprep.subr.mxu0 0.0
      %352 = vmatpush1.msra.mxu0 0.0
      %353 = vmatprep.subr.mxu0 0.0
      %354 = vmatpush1.msra.mxu0 0.0
      %355 = vmatprep.subr.mxu0 0.0
      %356 = vmatpush1.msra.mxu0 0.0
      %357 = vmatprep.subr.mxu0 0.0
      %358 = vmatpush1.msra.mxu0 0.0
      %359 = vmatprep.subr.mxu0 0.0
      %360 = vmatpush1.msra.mxu0 0.0
      %361 = vmatprep.subr.mxu0 0.0
      %362 = vmatpush1.msra.mxu0 0.0
      %363 = vmatprep.subr.mxu0 0.0
      %364 = vmatpush1.msra.mxu0 0.0
      %365 = vmatprep.subr.mxu0 0.0
      %366 = vmatpush1.msra.mxu0 0.0
      %367 = vmatprep.subr.mxu0 0.0
      %368 = vmatpush1.msra.mxu0 0.0
      %369 = vmatprep.subr.mxu0 0.0
      %370 = vmatpush1.msra.mxu0 0.0
      %371 = vmatprep.subr.mxu0 0.0
      %372 = vmatpush1.msra.mxu0 0.0
      %373 = vmatprep.mubr.f32.mxu0 0.0
      %374 = vmatmul.mubr.f32.gmra.mrb[0].mxu0 %v307
      %v375 = vpop.f32.mrb[0].mxu0
      %v376 = vadd.f32 0.0, %v375
      %v377 = vpop.f32.mrb[0].mxu0
      %378 = vdwg.mxu0
      %379 = vst.msk [vmem:[%s206] sm:$0xff] %vm210, %v376
      %p380 = scmp.lt.s32.totalorder %s21, 7
      %s381 = scalar_select %p380, %s21, 7
      %s382 = smul.addr %s381, 8
      %s383 = scalar_lea.vmem %s4, %s382
      // Predicated region
      $region33: #{decoder_block.17} parent=31 // pred_check
        %p384 = pneg %p117
      $region34: #{decoder_block.17} parent=31 // pred_check_branch
        %386 = sbr.rel (%p384) target = $region36
      $region35: #{decoder_block.17} parent=31 // pred_region
        _
      $region36: #{decoder_block.17} parent=31 // pred_fallthru
        _
    $region32: #{decoder_block.17} parent=5 // pred_fallthru
      _
    %p387 = scmp.le.s32.totalorder 2, %s16
    // Predicated region
    $region37: #{decoder_block.17} parent=5 // pred_check
      %p388 = pneg %p387
    $region38: #{decoder_block.17} parent=5 // pred_check_branch
      %390 = sbr.rel (%p388) target = $region40
    $region39: #{decoder_block.17} parent=5 // pred_region
      %s391 = ssub.s32 %s16, 2
      // Predicated region
      $region41: #{decoder_block.17} parent=39 // pred_check
        %p392 = pneg %p123
      $region42: #{decoder_block.17} parent=39 // pred_check_branch
        %394 = sbr.rel (%p392) target = $region44
      $region43: #{decoder_block.17} parent=39 // pred_region
        %p395 = scmp.lt.s32.totalorder %s22, 7
        %s396 = scalar_select %p395, %s22, 7
        %s397 = smul.addr %s396, 8
        %s398 = scalar_lea.vmem %s4, %s397
      $region44: #{decoder_block.17} parent=39 // pred_fallthru
        _
    $region40: #{decoder_block.17} parent=5 // pred_fallthru
      _
  $region6: #{decoder_block.17} parent=0 // loop_footer
    %s20 = sadd.s32 1, %s16
  $region7: #{decoder_block.17} parent=0 // loop_footer_branch
    %15 = sbr.rel target = $region3
  $region8: #{decoder_block.17} parent=0 // loop_exit
    _

// kernel: decoder_block.19
$region0: #{decoder_block.19}
  #allocation0 [shape = 'u32[]', space=smem, size = 0x4, offset = 0x4, fixed_abs, tag = 'smem constant byte address 0x4 - core index']
  #allocation1 [shape = 'u32[144,128]{1,0:T(1,128)}', space=vmem, size = 0x12000, scoped, tag = 'internal scratch']
  %s0 = inlined_call_operand.vmem [shape: f32[16,128], index: 0, kind: input, shape index: {}]
  %s1 = inlined_call_operand.vmem [shape: f32[16,128], index: 1, kind: input, shape index: {}]
  %s2 = inlined_call_operand.vmem [shape: f32[1,128], index: 2, kind: input, shape index: {}]
  %s3 = inlined_call_operand.vmem [shape: f32[1,128], index: 3, kind: input, shape index: {}]
  %s4 = inlined_call_operand.vmem [shape: f32[16,128], index: 4, kind: output, shape index: {}]
  %s5 = sld [smem:[#allocation0]]
  $region49: #{decoder_block.19} parent=0
    _
  %s7 = ssub.s32 1, %s5
  %s8 = scalar_select 0, %s7, %s5
  loop: start=0, step=1, limit=4
  $region2: #{decoder_block.19} parent=0 // loop_pre_header
    _
  $region3: #{decoder_block.19} parent=0 // loop_header
    %s10 = sphi 0, %s14
    %p11 = scmp.ge.s32.totalorder %s10, 4
    %s20 = sphi 0, %s22
    %s23 = sphi 0, %s20
    %s24 = sphi 0, %s23
    %s40 = sphi 0, %s24
    %s46 = sphi 0, %s48
    %s49 = sphi 0, %s46
    %s50 = sphi 0, %s49
    %s66 = sphi 0, %s50
    %s70 = sphi 0, %s70
    %s72 = sphi 0, %s70
    %s73 = sphi 0, %s72
    %s87 = sphi 0, %s73
    %s91 = sphi 0, %s91
    %s93 = sphi 0, %s91
    %s94 = sphi 0, %s93
    %s108 = sphi 0, %s94
    %s114 = sphi 0, %s116
    %s117 = sphi 0, %s114
    %s118 = sphi 0, %s117
    %s134 = sphi 0, %s118
  $region4: #{decoder_block.19} parent=0 // loop_header_branch
    %13 = sbr.rel (%p11) target = $region8
  $region5: #{decoder_block.19} parent=0 // loop_body
    %s15 = ssub.s32 %s10, 1
    %s16 = ssub.s32 %s10, 2
    %s17 = sadd.s32 %s10, 1
    %s18 = ssub.s32 %s10, %s17
    %p19 = scmp.eq.s32.totalorder %s18, 0
    %s21 = sadd.s32 %s20, 1
    %s22 = scalar_select %p19, %s20, %s21
    %p25 = pneg %p19
    %p26 = scmp.eq.s32.totalorder %s10, 1
    %p27 = por %p25, %p26
    %p28 = scmp.ne.s32.totalorder %s20, %s23
    %p29 = scmp.eq.s32.totalorder %s10, 0
    %p30 = por %p28, %p29
    %p31 = scmp.ne.s32.totalorder %s20, %s23
    %p32 = scmp.eq.s32.totalorder %s15, 1
    %p33 = por %p31, %p32
    %p34 = scmp.ne.s32.totalorder %s23, %s24
    %p35 = scmp.eq.s32.totalorder %s15, 0
    %p36 = por %p34, %p35
    %p37 = scmp.ne.s32.totalorder %s23, %s24
    %p38 = scmp.eq.s32.totalorder %s16, 1
    %p39 = por %p37, %p38
    %p41 = scmp.ne.s32.totalorder %s24, %s40
    %p42 = scmp.eq.s32.totalorder %s16, 0
    %p43 = por %p41, %p42
    %s44 = ssub.s32 %s10, %s17
    %p45 = scmp.eq.s32.totalorder %s44, 0
    %s47 = sadd.s32 %s46, 1
    %s48 = scalar_select %p45, %s46, %s47
    %p51 = pneg %p45
    %p52 = scmp.eq.s32.totalorder %s10, 1
    %p53 = por %p51, %p52
    %p54 = scmp.ne.s32.totalorder %s46, %s49
    %p55 = scmp.eq.s32.totalorder %s10, 0
    %p56 = por %p54, %p55
    %p57 = scmp.ne.s32.totalorder %s46, %s49
    %p58 = scmp.eq.s32.totalorder %s15, 1
    %p59 = por %p57, %p58
    %p60 = scmp.ne.s32.totalorder %s49, %s50
    %p61 = scmp.eq.s32.totalorder %s15, 0
    %p62 = por %p60, %p61
    %p63 = scmp.ne.s32.totalorder %s49, %s50
    %p64 = scmp.eq.s32.totalorder %s16, 1
    %p65 = por %p63, %p64
    %p67 = scmp.ne.s32.totalorder %s50, %s66
    %p68 = scmp.eq.s32.totalorder %s16, 0
    %p69 = por %p67, %p68
    %s71 = sadd.s32 %s70, 1
    %p74 = scmp.eq.s32.totalorder %s10, 1
    %p75 = scmp.ne.s32.totalorder %s70, %s72
    %p76 = scmp.eq.s32.totalorder %s10, 0
    %p77 = por %p75, %p76
    %p78 = scmp.ne.s32.totalorder %s70, %s72
    %p79 = scmp.eq.s32.totalorder %s15, 1
    %p80 = por %p78, %p79
    %p81 = scmp.ne.s32.totalorder %s72, %s73
    %p82 = scmp.eq.s32.totalorder %s15, 0
    %p83 = por %p81, %p82
    %p84 = scmp.ne.s32.totalorder %s72, %s73
    %p85 = scmp.eq.s32.totalorder %s16, 1
    %p86 = por %p84, %p85
    %p88 = scmp.ne.s32.totalorder %s73, %s87
    %p89 = scmp.eq.s32.totalorder %s16, 0
    %p90 = por %p88, %p89
    %s92 = sadd.s32 %s91, 1
    %p95 = scmp.eq.s32.totalorder %s10, 1
    %p96 = scmp.ne.s32.totalorder %s91, %s93
    %p97 = scmp.eq.s32.totalorder %s10, 0
    %p98 = por %p96, %p97
    %p99 = scmp.ne.s32.totalorder %s91, %s93
    %p100 = scmp.eq.s32.totalorder %s15, 1
    %p101 = por %p99, %p100
    %p102 = scmp.ne.s32.totalorder %s93, %s94
    %p103 = scmp.eq.s32.totalorder %s15, 0
    %p104 = por %p102, %p103
    %p105 = scmp.ne.s32.totalorder %s93, %s94
    %p106 = scmp.eq.s32.totalorder %s16, 1
    %p107 = por %p105, %p106
    %p109 = scmp.ne.s32.totalorder %s94, %s108
    %p110 = scmp.eq.s32.totalorder %s16, 0
    %p111 = por %p109, %p110
    %s112 = ssub.s32 %s10, %s17
    %p113 = scmp.eq.s32.totalorder %s112, 0
    %s115 = sadd.s32 %s114, 1
    %s116 = scalar_select %p113, %s114, %s115
    %p119 = pneg %p113
    %p120 = scmp.eq.s32.totalorder %s10, 1
    %p121 = por %p119, %p120
    %p122 = scmp.ne.s32.totalorder %s114, %s117
    %p123 = scmp.eq.s32.totalorder %s10, 0
    %p124 = por %p122, %p123
    %p125 = scmp.ne.s32.totalorder %s114, %s117
    %p126 = scmp.eq.s32.totalorder %s15, 1
    %p127 = por %p125, %p126
    %p128 = scmp.ne.s32.totalorder %s117, %s118
    %p129 = scmp.eq.s32.totalorder %s15, 0
    %p130 = por %p128, %p129
    %p131 = scmp.ne.s32.totalorder %s117, %s118
    %p132 = scmp.eq.s32.totalorder %s16, 1
    %p133 = por %p131, %p132
    %p135 = scmp.ne.s32.totalorder %s118, %s134
    %p136 = scmp.eq.s32.totalorder %s16, 0
    %p137 = por %p135, %p136
    %p138 = scmp.le.s32.totalorder 1, %s10
    %p139 = scmp.lt.s32.totalorder %s10, 3
    %p140 = pnand %p138, %p139
    %p141 = pneg %p140
    // Predicated region
    $region9: #{decoder_block.19} parent=5 // pred_check
      _
    $region10: #{decoder_block.19} parent=5 // pred_check_branch
      %143 = sbr.rel (%p140) target = $region12
    $region11: #{decoder_block.19} parent=5 // pred_region
      %s144 = ssub.s32 %s10, 1
      // Predicated region
      $region13: #{decoder_block.19} parent=11 // pred_check
        %p145 = pneg %p83
      $region14: #{decoder_block.19} parent=11 // pred_check_branch
        %147 = sbr.rel (%p145) target = $region16
      $region15: #{decoder_block.19} parent=11 // pred_region
        _
      $region16: #{decoder_block.19} parent=11 // pred_fallthru
        _
      // Predicated region
      $region17: #{decoder_block.19} parent=11 // pred_check
        %p148 = pneg %p104
      $region18: #{decoder_block.19} parent=11 // pred_check_branch
        %150 = sbr.rel (%p148) target = $region20
      $region19: #{decoder_block.19} parent=11 // pred_region
        _
      $region20: #{decoder_block.19} parent=11 // pred_fallthru
        _
    $region12: #{decoder_block.19} parent=5 // pred_fallthru
      _
    %p151 = scmp.lt.s32.totalorder %s10, 2
    // Predicated region
    $region21: #{decoder_block.19} parent=5 // pred_check
      %p152 = pneg %p151
    $region22: #{decoder_block.19} parent=5 // pred_check_branch
      %154 = sbr.rel (%p152) target = $region24
    $region23: #{decoder_block.19} parent=5 // pred_region
      // Predicated region
      $region25: #{decoder_block.19} parent=23 // pred_check
        %p155 = pneg %p30
      $region26: #{decoder_block.19} parent=23 // pred_check_branch
        %157 = sbr.rel (%p155) target = $region28
      $region27: #{decoder_block.19} parent=23 // pred_region
        %p158 = scmp.lt.s32.totalorder %s10, 1
        %s159 = scalar_select %p158, %s10, 1
        %s160 = smul.addr %s159, 8
        %s161 = scalar_lea.vmem %s0, %s160
      $region28: #{decoder_block.19} parent=23 // pred_fallthru
        _
      // Predicated region
      $region29: #{decoder_block.19} parent=23 // pred_check
        %p162 = pneg %p56
      $region30: #{decoder_block.19} parent=23 // pred_check_branch
        %164 = sbr.rel (%p162) target = $region32
      $region31: #{decoder_block.19} parent=23 // pred_region
        %p165 = scmp.lt.s32.totalorder %s10, 1
        %s166 = scalar_select %p165, %s10, 1
        %s167 = smul.addr %s166, 8
        %s168 = scalar_lea.vmem %s1, %s167
      $region32: #{decoder_block.19} parent=23 // pred_fallthru
        _
    $region24: #{decoder_block.19} parent=5 // pred_fallthru
      _
    %p169 = scmp.le.s32.totalorder 1, %s10
    %p170 = scmp.lt.s32.totalorder %s10, 3
    %p171 = pnand %p169, %p170
    %p172 = pneg %p171
    // Predicated region
    $region33: #{decoder_block.19} parent=5 // pred_check
      _
    $region34: #{decoder_block.19} parent=5 // pred_check_branch
      %174 = sbr.rel (%p171) target = $region36
    $region35: #{decoder_block.19} parent=5 // pred_region
      %s175 = ssub.s32 %s10, 1
      %p176 = scmp.lt.s32.totalorder %s15, 1
      %s177 = scalar_select %p176, %s15, 1
      %s178 = smul.addr %s177, 8
      %s179 = scalar_lea.vmem %s0, %s178
      %p180 = pneg %p36
      %p181 = pneg %p33
      %p182 = scmp.lt.s32.totalorder %s15, 1
      %s183 = scalar_select %p182, %s15, 1
      %s184 = smul.addr %s183, 8
      %s185 = scalar_lea.vmem %s1, %s184
      %p186 = pneg %p62
      %p187 = pneg %p59
      %p188 = pneg %p83
      %p189 = pneg %p80
      %p190 = pneg %p104
      %p191 = pneg %p101
      %p192 = pneg %p130
      %p193 = pneg %p127
      %p194 = scmp.lt.s32.totalorder %s15, 1
      %s195 = scalar_select %p194, %s15, 1
      %s196 = smul.addr %s195, 8
      %s197 = scalar_lea.vmem %s4, %s196
      %p198 = scmp.lt.s32.totalorder %s15, 1
      %s199 = scalar_select %p198, %s15, 1
      %s200 = smul.addr %s199, 8
      %s201 = scalar_lea.vmem %s0, %s200
      %p202 = scmp.lt.s32.totalorder %s15, 1
      %s203 = scalar_select %p202, %s15, 1
      %s204 = smul.addr %s203, 8
      %s205 = scalar_lea.vmem %s1, %s204
      %p206 = scmp.lt.s32.totalorder %s15, 1
      %s207 = scalar_select %p206, %s15, 1
      %s208 = smul.addr %s207, 8
      %s209 = scalar_lea.vmem %s4, %s208
      %v210 = vld [vmem:[%s205] sm:$0xff]
      %v211 = vld [vmem:[%s201] sm:$0xff]
      %v212 = vadd.f32 %v210, %v211
      %213 = vadd.xlane.f32.xlu0 %v212
      %v214 = vpop.xlane.xlu0 %213
      %v215 = vrcp.pop 128.0
      %v216 = vmul.f32 %v214, %v215
      %v217 = vsub.f32 %v212, %v216
      %v218 = vmul.f32 %v217, %v217
      %219 = vadd.xlane.f32.xlu0 %v218
      %v220 = vpop.xlane.xlu0 %219
      %v221 = vmul.f32 %v220, %v215
      %v222 = vadd.f32 %v221, 1e-05
      %v223 = vrsqrt.pop %v222
      %v224 = vmul.f32 %v217, %v223
      %v225 = vld [vmem:[%s2] sm:$0x1]
      %v227 = vlaneseq
      %v228 = vshrl.u32 %v227, 7
      %v229 = vsub.s32 0, %v228
      %v230 = vrot.slane %v225, %v229
      %v232 = vmul.f32 %v224, %v230
      %v233 = vld [vmem:[%s3] sm:$0x1]
      %v235 = vlaneseq
      %v236 = vshrl.u32 %v235, 7
      %v237 = vsub.s32 0, %v236
      %v238 = vrot.slane %v233, %v237
      %v240 = vadd.f32 %v232, %v238
      %241 = vst [vmem:[%s209] sm:$0xff] %v240
      %p242 = scmp.lt.s32.totalorder %s15, 1
      %s243 = scalar_select %p242, %s15, 1
      %s244 = smul.addr %s243, 8
      %s245 = scalar_lea.vmem %s4, %s244
      // Predicated region
      $region37: #{decoder_block.19} parent=35 // pred_check
        %p246 = pneg %p127
      $region38: #{decoder_block.19} parent=35 // pred_check_branch
        %248 = sbr.rel (%p246) target = $region40
      $region39: #{decoder_block.19} parent=35 // pred_region
        _
      $region40: #{decoder_block.19} parent=35 // pred_fallthru
        _
    $region36: #{decoder_block.19} parent=5 // pred_fallthru
      _
    %p249 = scmp.le.s32.totalorder 2, %s10
    // Predicated region
    $region41: #{decoder_block.19} parent=5 // pred_check
      %p250 = pneg %p249
    $region42: #{decoder_block.19} parent=5 // pred_check_branch
      %252 = sbr.rel (%p250) target = $region44
    $region43: #{decoder_block.19} parent=5 // pred_region
      %s253 = ssub.s32 %s10, 2
      // Predicated region
      $region45: #{decoder_block.19} parent=43 // pred_check
        %p254 = pneg %p133
      $region46: #{decoder_block.19} parent=43 // pred_check_branch
        %256 = sbr.rel (%p254) target = $region48
      $region47: #{decoder_block.19} parent=43 // pred_region
        %p257 = scmp.lt.s32.totalorder %s16, 1
        %s258 = scalar_select %p257, %s16, 1
        %s259 = smul.addr %s258, 8
        %s260 = scalar_lea.vmem %s4, %s259
      $region48: #{decoder_block.19} parent=43 // pred_fallthru
        _
    $region44: #{decoder_block.19} parent=5 // pred_fallthru
      _
  $region6: #{decoder_block.19} parent=0 // loop_footer
    %s14 = sadd.s32 1, %s10
  $region7: #{decoder_block.19} parent=0 // loop_footer_branch
    %9 = sbr.rel target = $region3
  $region8: #{decoder_block.19} parent=0 // loop_exit
    _

// kernel: decoder_block.27
$region0: #{decoder_block.27}
  #allocation0 [shape = 'u32[]', space=smem, size = 0x4, offset = 0x4, fixed_abs, tag = 'smem constant byte address 0x4 - core index']
  #allocation1 [shape = 'u32[144,128]{1,0:T(1,128)}', space=vmem, size = 0x12000, scoped, tag = 'internal scratch']
  %s0 = inlined_call_operand.vmem [shape: f32[16,128], index: 0, kind: input, shape index: {}]
  %s1 = inlined_call_operand.vmem [shape: f32[16,128], index: 1, kind: input, shape index: {}]
  %s2 = inlined_call_operand.vmem [shape: f32[1,128], index: 2, kind: input, shape index: {}]
  %s3 = inlined_call_operand.vmem [shape: f32[1,128], index: 3, kind: input, shape index: {}]
  %s4 = inlined_call_operand.hbm [shape: f32[16,128], index: 4, kind: output, shape index: {}]
  %s5 = sld [smem:[#allocation0]]
  $region49: #{decoder_block.27} parent=0
    _
  %s7 = ssub.s32 1, %s5
  %s8 = scalar_select 0, %s7, %s5
  $region1: #{decoder_block.27} parent=0
    #allocation2 [shape = 'u8[8192]{0}', space=vmem, size = 0x2000, scoped, tag = 'output window, operand 0']
    #allocation3 [shape = 's32[2]{0}', space=sflag, size = 0x8, scoped, tag = 'scoped memory for decoder_block.27']
    %9 = vsyncpa [#allocation3], 0
    %s10 = scalar_lea.sflag [#allocation3], 1
    %11 = vsyncpa %s10, 0
    loop: start=0, step=1, limit=4
    $region2: #{decoder_block.27} parent=1 // loop_pre_header
      _
    $region3: #{decoder_block.27} parent=1 // loop_header
      %s13 = sphi 0, %s17
      %p14 = scmp.ge.s32.totalorder %s13, 4
      %s23 = sphi 0, %s25
      %s26 = sphi 0, %s23
      %s27 = sphi 0, %s26
      %s43 = sphi 0, %s27
      %s49 = sphi 0, %s51
      %s52 = sphi 0, %s49
      %s53 = sphi 0, %s52
      %s69 = sphi 0, %s53
      %s73 = sphi 0, %s73
      %s75 = sphi 0, %s73
      %s76 = sphi 0, %s75
      %s90 = sphi 0, %s76
      %s94 = sphi 0, %s94
      %s96 = sphi 0, %s94
      %s97 = sphi 0, %s96
      %s111 = sphi 0, %s97
      %s117 = sphi 0, %s119
      %s120 = sphi 0, %s117
      %s121 = sphi 0, %s120
      %s137 = sphi 0, %s121
    $region4: #{decoder_block.27} parent=1 // loop_header_branch
      %16 = sbr.rel (%p14) target = $region8
    $region5: #{decoder_block.27} parent=1 // loop_body
      %s18 = ssub.s32 %s13, 1
      %s19 = ssub.s32 %s13, 2
      %s20 = sadd.s32 %s13, 1
      %s21 = ssub.s32 %s13, %s20
      %p22 = scmp.eq.s32.totalorder %s21, 0
      %s24 = sadd.s32 %s23, 1
      %s25 = scalar_select %p22, %s23, %s24
      %p28 = pneg %p22
      %p29 = scmp.eq.s32.totalorder %s13, 1
      %p30 = por %p28, %p29
      %p31 = scmp.ne.s32.totalorder %s23, %s26
      %p32 = scmp.eq.s32.totalorder %s13, 0
      %p33 = por %p31, %p32
      %p34 = scmp.ne.s32.totalorder %s23, %s26
      %p35 = scmp.eq.s32.totalorder %s18, 1
      %p36 = por %p34, %p35
      %p37 = scmp.ne.s32.totalorder %s26, %s27
      %p38 = scmp.eq.s32.totalorder %s18, 0
      %p39 = por %p37, %p38
      %p40 = scmp.ne.s32.totalorder %s26, %s27
      %p41 = scmp.eq.s32.totalorder %s19, 1
      %p42 = por %p40, %p41
      %p44 = scmp.ne.s32.totalorder %s27, %s43
      %p45 = scmp.eq.s32.totalorder %s19, 0
      %p46 = por %p44, %p45
      %s47 = ssub.s32 %s13, %s20
      %p48 = scmp.eq.s32.totalorder %s47, 0
      %s50 = sadd.s32 %s49, 1
      %s51 = scalar_select %p48, %s49, %s50
      %p54 = pneg %p48
      %p55 = scmp.eq.s32.totalorder %s13, 1
      %p56 = por %p54, %p55
      %p57 = scmp.ne.s32.totalorder %s49, %s52
      %p58 = scmp.eq.s32.totalorder %s13, 0
      %p59 = por %p57, %p58
      %p60 = scmp.ne.s32.totalorder %s49, %s52
      %p61 = scmp.eq.s32.totalorder %s18, 1
      %p62 = por %p60, %p61
      %p63 = scmp.ne.s32.totalorder %s52, %s53
      %p64 = scmp.eq.s32.totalorder %s18, 0
      %p65 = por %p63, %p64
      %p66 = scmp.ne.s32.totalorder %s52, %s53
      %p67 = scmp.eq.s32.totalorder %s19, 1
      %p68 = por %p66, %p67
      %p70 = scmp.ne.s32.totalorder %s53, %s69
      %p71 = scmp.eq.s32.totalorder %s19, 0
      %p72 = por %p70, %p71
      %s74 = sadd.s32 %s73, 1
      %p77 = scmp.eq.s32.totalorder %s13, 1
      %p78 = scmp.ne.s32.totalorder %s73, %s75
      %p79 = scmp.eq.s32.totalorder %s13, 0
      %p80 = por %p78, %p79
      %p81 = scmp.ne.s32.totalorder %s73, %s75
      %p82 = scmp.eq.s32.totalorder %s18, 1
      %p83 = por %p81, %p82
      %p84 = scmp.ne.s32.totalorder %s75, %s76
      %p85 = scmp.eq.s32.totalorder %s18, 0
      %p86 = por %p84, %p85
      %p87 = scmp.ne.s32.totalorder %s75, %s76
      %p88 = scmp.eq.s32.totalorder %s19, 1
      %p89 = por %p87, %p88
      %p91 = scmp.ne.s32.totalorder %s76, %s90
      %p92 = scmp.eq.s32.totalorder %s19, 0
      %p93 = por %p91, %p92
      %s95 = sadd.s32 %s94, 1
      %p98 = scmp.eq.s32.totalorder %s13, 1
      %p99 = scmp.ne.s32.totalorder %s94, %s96
      %p100 = scmp.eq.s32.totalorder %s13, 0
      %p101 = por %p99, %p100
      %p102 = scmp.ne.s32.totalorder %s94, %s96
      %p103 = scmp.eq.s32.totalorder %s18, 1
      %p104 = por %p102, %p103
      %p105 = scmp.ne.s32.totalorder %s96, %s97
      %p106 = scmp.eq.s32.totalorder %s18, 0
      %p107 = por %p105, %p106
      %p108 = scmp.ne.s32.totalorder %s96, %s97
      %p109 = scmp.eq.s32.totalorder %s19, 1
      %p110 = por %p108, %p109
      %p112 = scmp.ne.s32.totalorder %s97, %s111
      %p113 = scmp.eq.s32.totalorder %s19, 0
      %p114 = por %p112, %p113
      %s115 = ssub.s32 %s13, %s20
      %p116 = scmp.eq.s32.totalorder %s115, 0
      %s118 = sadd.s32 %s117, 1
      %s119 = scalar_select %p116, %s117, %s118
      %p122 = pneg %p116
      %p123 = scmp.eq.s32.totalorder %s13, 1
      %p124 = por %p122, %p123
      %p125 = scmp.ne.s32.totalorder %s117, %s120
      %p126 = scmp.eq.s32.totalorder %s13, 0
      %p127 = por %p125, %p126
      %p128 = scmp.ne.s32.totalorder %s117, %s120
      %p129 = scmp.eq.s32.totalorder %s18, 1
      %p130 = por %p128, %p129
      %p131 = scmp.ne.s32.totalorder %s120, %s121
      %p132 = scmp.eq.s32.totalorder %s18, 0
      %p133 = por %p131, %p132
      %p134 = scmp.ne.s32.totalorder %s120, %s121
      %p135 = scmp.eq.s32.totalorder %s19, 1
      %p136 = por %p134, %p135
      %p138 = scmp.ne.s32.totalorder %s121, %s137
      %p139 = scmp.eq.s32.totalorder %s19, 0
      %p140 = por %p138, %p139
      %p141 = scmp.le.s32.totalorder 1, %s13
      %p142 = scmp.lt.s32.totalorder %s13, 3
      %p143 = pnand %p141, %p142
      %p144 = pneg %p143
      // Predicated region
      $region9: #{decoder_block.27} parent=5 // pred_check
        _
      $region10: #{decoder_block.27} parent=5 // pred_check_branch
        %146 = sbr.rel (%p143) target = $region12
      $region11: #{decoder_block.27} parent=5 // pred_region
        %s147 = ssub.s32 %s13, 1
        // Predicated region
        $region13: #{decoder_block.27} parent=11 // pred_check
          %p148 = pneg %p86
        $region14: #{decoder_block.27} parent=11 // pred_check_branch
          %150 = sbr.rel (%p148) target = $region16
        $region15: #{decoder_block.27} parent=11 // pred_region
          _
        $region16: #{decoder_block.27} parent=11 // pred_fallthru
          _
        // Predicated region
        $region17: #{decoder_block.27} parent=11 // pred_check
          %p151 = pneg %p107
        $region18: #{decoder_block.27} parent=11 // pred_check_branch
          %153 = sbr.rel (%p151) target = $region20
        $region19: #{decoder_block.27} parent=11 // pred_region
          _
        $region20: #{decoder_block.27} parent=11 // pred_fallthru
          _
      $region12: #{decoder_block.27} parent=5 // pred_fallthru
        _
      %p154 = scmp.lt.s32.totalorder %s13, 2
      // Predicated region
      $region21: #{decoder_block.27} parent=5 // pred_check
        %p155 = pneg %p154
      $region22: #{decoder_block.27} parent=5 // pred_check_branch
        %157 = sbr.rel (%p155) target = $region24
      $region23: #{decoder_block.27} parent=5 // pred_region
        // Predicated region
        $region25: #{decoder_block.27} parent=23 // pred_check
          %p158 = pneg %p33
        $region26: #{decoder_block.27} parent=23 // pred_check_branch
          %160 = sbr.rel (%p158) target = $region28
        $region27: #{decoder_block.27} parent=23 // pred_region
          %p161 = scmp.lt.s32.totalorder %s13, 1
          %s162 = scalar_select %p161, %s13, 1
          %s163 = smul.addr %s162, 8
          %s164 = scalar_lea.vmem %s0, %s163
        $region28: #{decoder_block.27} parent=23 // pred_fallthru
          _
        // Predicated region
        $region29: #{decoder_block.27} parent=23 // pred_check
          %p165 = pneg %p59
        $region30: #{decoder_block.27} parent=23 // pred_check_branch
          %167 = sbr.rel (%p165) target = $region32
        $region31: #{decoder_block.27} parent=23 // pred_region
          %p168 = scmp.lt.s32.totalorder %s13, 1
          %s169 = scalar_select %p168, %s13, 1
          %s170 = smul.addr %s169, 8
          %s171 = scalar_lea.vmem %s1, %s170
        $region32: #{decoder_block.27} parent=23 // pred_fallthru
          _
      $region24: #{decoder_block.27} parent=5 // pred_fallthru
        _
      %p172 = scmp.le.s32.totalorder 1, %s13
      %p173 = scmp.lt.s32.totalorder %s13, 3
      %p174 = pnand %p172, %p173
      %p175 = pneg %p174
      // Predicated region
      $region33: #{decoder_block.27} parent=5 // pred_check
        _
      $region34: #{decoder_block.27} parent=5 // pred_check_branch
        %177 = sbr.rel (%p174) target = $region36
      $region35: #{decoder_block.27} parent=5 // pred_region
        %s178 = ssub.s32 %s13, 1
        %p179 = scmp.lt.s32.totalorder %s18, 1
        %s180 = scalar_select %p179, %s18, 1
        %s181 = smul.addr %s180, 8
        %s182 = scalar_lea.vmem %s0, %s181
        %p183 = pneg %p39
        %p184 = pneg %p36
        %p185 = scmp.lt.s32.totalorder %s18, 1
        %s186 = scalar_select %p185, %s18, 1
        %s187 = smul.addr %s186, 8
        %s188 = scalar_lea.vmem %s1, %s187
        %p189 = pneg %p65
        %p190 = pneg %p62
        %p191 = pneg %p86
        %p192 = pneg %p83
        %p193 = pneg %p107
        %p194 = pneg %p104
        %p195 = pneg %p133
        %p196 = pneg %p130
        %s197 = sand.u32 %s120, 1
        %s198 = scalar_lea.sflag [#allocation3], %s197
        %s199 = sand.u32 %s120, 1
        %s200 = smul.addr %s199, 8
        %s201 = scalar_lea.vmem [#allocation2], %s200
        %p202 = scmp.lt.s32.totalorder %s18, 1
        %s203 = scalar_select %p202, %s18, 1
        %s204 = smul.addr %s203, 8
        %s205 = scalar_lea.vmem %s0, %s204
        %p206 = scmp.lt.s32.totalorder %s18, 1
        %s207 = scalar_select %p206, %s18, 1
        %s208 = smul.addr %s207, 8
        %s209 = scalar_lea.vmem %s1, %s208
        %v210 = vld [vmem:[%s209] sm:$0xff]
        %v211 = vld [vmem:[%s205] sm:$0xff]
        %v212 = vadd.f32 %v210, %v211
        %213 = vadd.xlane.f32.xlu0 %v212
        %v214 = vpop.xlane.xlu0 %213
        %v215 = vrcp.pop 128.0
        %v216 = vmul.f32 %v214, %v215
        %v217 = vsub.f32 %v212, %v216
        %v218 = vmul.f32 %v217, %v217
        %219 = vadd.xlane.f32.xlu0 %v218
        %v220 = vpop.xlane.xlu0 %219
        %v221 = vmul.f32 %v220, %v215
        %v222 = vadd.f32 %v221, 1e-05
        %v223 = vrsqrt.pop %v222
        %v224 = vmul.f32 %v217, %v223
        %v225 = vld [vmem:[%s2] sm:$0x1]
        %v227 = vlaneseq
        %v228 = vshrl.u32 %v227, 7
        %v229 = vsub.s32 0, %v228
        %v230 = vrot.slane %v225, %v229
        %v232 = vmul.f32 %v224, %v230
        %v233 = vld [vmem:[%s3] sm:$0x1]
        %v235 = vlaneseq
        %v236 = vshrl.u32 %v235, 7
        %v237 = vsub.s32 0, %v236
        %v238 = vrot.slane %v233, %v237
        %v240 = vadd.f32 %v232, %v238
        %241 = vst [vmem:[%s201] sm:$0xff] %v240
        %s242 = sand.u32 %s120, 1
        %s243 = scalar_lea.sflag [#allocation3], %s242
        %s244 = sand.u32 %s120, 1
        %s245 = smul.addr %s244, 8
        %s246 = scalar_lea.vmem [#allocation2], %s245
        // Predicated region
        $region37: #{decoder_block.27} parent=35 // pred_check
          %p247 = pneg %p130
        $region38: #{decoder_block.27} parent=35 // pred_check_branch
          %249 = sbr.rel (%p247) target = $region40
        $region39: #{decoder_block.27} parent=35 // pred_region
          %s251 = ssub.s32 128, 128
          %252 = vsyncadd %s243, %s251
          %s253 = smul.addr %s18, 128
          %s254 = scalar_lea.hbm %s4, %s253
          %s256 = sshll.u32 %s246, 4
          %s257 = int_to_ptr.vmem [resolvable:$true] %s256
          %259 = dma.vmem_to_hbm [thread:$0]  %s257, 128, %s254, %s243
        $region40: #{decoder_block.27} parent=35 // pred_fallthru
          _
      $region36: #{decoder_block.27} parent=5 // pred_fallthru
        _
      %p260 = scmp.le.s32.totalorder 2, %s13
      // Predicated region
      $region41: #{decoder_block.27} parent=5 // pred_check
        %p261 = pneg %p260
      $region42: #{decoder_block.27} parent=5 // pred_check_branch
        %263 = sbr.rel (%p261) target = $region44
      $region43: #{decoder_block.27} parent=5 // pred_region
        %s264 = ssub.s32 %s13, 2
        // Predicated region
        $region45: #{decoder_block.27} parent=43 // pred_check
          %p265 = pneg %p136
        $region46: #{decoder_block.27} parent=43 // pred_check_branch
          %267 = sbr.rel (%p265) target = $region48
        $region47: #{decoder_block.27} parent=43 // pred_region
          %s268 = sand.u32 %s121, 1
          %s269 = scalar_lea.sflag [#allocation3], %s268
          %s270 = sand.u32 %s121, 1
          %s271 = smul.addr %s270, 8
          %s272 = scalar_lea.vmem [#allocation2], %s271
          %273 = dma.done %s269, 128
        $region48: #{decoder_block.27} parent=43 // pred_fallthru
          _
      $region44: #{decoder_block.27} parent=5 // pred_fallthru
        _
    $region6: #{decoder_block.27} parent=1 // loop_footer
      %s17 = sadd.s32 1, %s13
    $region7: #{decoder_block.27} parent=1 // loop_footer_branch
      %12 = sbr.rel target = $region3
    $region8: #{decoder_block.27} parent=1 // loop_exit
      _
    %274 = vsyncpa [#allocation3], 1
    %s275 = scalar_lea.sflag [#allocation3], 1
    %276 = vsyncpa %s275, 1

// kernel: decoder_block.26
$region0: #{decoder_block.26}
  #allocation0 [shape = 'u32[]', space=smem, size = 0x4, offset = 0x4, fixed_abs, tag = 'smem constant byte address 0x4 - core index']
  #allocation1 [shape = 'u32[144,128]{1,0:T(1,128)}', space=vmem, size = 0x12000, scoped, tag = 'internal scratch']
  %s0 = inlined_call_operand.vmem [shape: f32[16,128], index: 0, kind: input, shape index: {}]
  %s1 = inlined_call_operand.vmem [shape: f32[128,256], index: 1, kind: input, shape index: {}]
  %s2 = inlined_call_operand.vmem [shape: f32[1,256], index: 2, kind: input, shape index: {}]
  %s3 = inlined_call_operand.vmem [shape: f32[256,128], index: 3, kind: input, shape index: {}]
  %s4 = inlined_call_operand.vmem [shape: f32[1,128], index: 4, kind: input, shape index: {}]
  %s5 = inlined_call_operand.vmem [shape: f32[16,128], index: 5, kind: output, shape index: {}]
  %s6 = sld [smem:[#allocation0]]
  $region53: #{decoder_block.26} parent=0
    _
  %s8 = ssub.s32 1, %s6
  %s9 = scalar_select 0, %s8, %s6
  loop: start=0, step=1, limit=4
  $region2: #{decoder_block.26} parent=0 // loop_pre_header
    _
  $region3: #{decoder_block.26} parent=0 // loop_header
    %s11 = sphi 0, %s15
    %p12 = scmp.ge.s32.totalorder %s11, 4
    %s21 = sphi 0, %s23
    %s24 = sphi 0, %s21
    %s25 = sphi 0, %s24
    %s41 = sphi 0, %s25
    %s45 = sphi 0, %s45
    %s47 = sphi 0, %s45
    %s48 = sphi 0, %s47
    %s62 = sphi 0, %s48
    %s66 = sphi 0, %s66
    %s68 = sphi 0, %s66
    %s69 = sphi 0, %s68
    %s83 = sphi 0, %s69
    %s87 = sphi 0, %s87
    %s89 = sphi 0, %s87
    %s90 = sphi 0, %s89
    %s104 = sphi 0, %s90
    %s108 = sphi 0, %s108
    %s110 = sphi 0, %s108
    %s111 = sphi 0, %s110
    %s125 = sphi 0, %s111
    %s131 = sphi 0, %s133
    %s134 = sphi 0, %s131
    %s135 = sphi 0, %s134
    %s151 = sphi 0, %s135
  $region4: #{decoder_block.26} parent=0 // loop_header_branch
    %14 = sbr.rel (%p12) target = $region8
  $region5: #{decoder_block.26} parent=0 // loop_body
    %s16 = ssub.s32 %s11, 1
    %s17 = ssub.s32 %s11, 2
    %s18 = sadd.s32 %s11, 1
    %s19 = ssub.s32 %s11, %s18
    %p20 = scmp.eq.s32.totalorder %s19, 0
    %s22 = sadd.s32 %s21, 1
    %s23 = scalar_select %p20, %s21, %s22
    %p26 = pneg %p20
    %p27 = scmp.eq.s32.totalorder %s11, 1
    %p28 = por %p26, %p27
    %p29 = scmp.ne.s32.totalorder %s21, %s24
    %p30 = scmp.eq.s32.totalorder %s11, 0
    %p31 = por %p29, %p30
    %p32 = scmp.ne.s32.totalorder %s21, %s24
    %p33 = scmp.eq.s32.totalorder %s16, 1
    %p34 = por %p32, %p33
    %p35 = scmp.ne.s32.totalorder %s24, %s25
    %p36 = scmp.eq.s32.totalorder %s16, 0
    %p37 = por %p35, %p36
    %p38 = scmp.ne.s32.totalorder %s24, %s25
    %p39 = scmp.eq.s32.totalorder %s17, 1
    %p40 = por %p38, %p39
    %p42 = scmp.ne.s32.totalorder %s25, %s41
    %p43 = scmp.eq.s32.totalorder %s17, 0
    %p44 = por %p42, %p43
    %s46 = sadd.s32 %s45, 1
    %p49 = scmp.eq.s32.totalorder %s11, 1
    %p50 = scmp.ne.s32.totalorder %s45, %s47
    %p51 = scmp.eq.s32.totalorder %s11, 0
    %p52 = por %p50, %p51
    %p53 = scmp.ne.s32.totalorder %s45, %s47
    %p54 = scmp.eq.s32.totalorder %s16, 1
    %p55 = por %p53, %p54
    %p56 = scmp.ne.s32.totalorder %s47, %s48
    %p57 = scmp.eq.s32.totalorder %s16, 0
    %p58 = por %p56, %p57
    %p59 = scmp.ne.s32.totalorder %s47, %s48
    %p60 = scmp.eq.s32.totalorder %s17, 1
    %p61 = por %p59, %p60
    %p63 = scmp.ne.s32.totalorder %s48, %s62
    %p64 = scmp.eq.s32.totalorder %s17, 0
    %p65 = por %p63, %p64
    %s67 = sadd.s32 %s66, 1
    %p70 = scmp.eq.s32.totalorder %s11, 1
    %p71 = scmp.ne.s32.totalorder %s66, %s68
    %p72 = scmp.eq.s32.totalorder %s11, 0
    %p73 = por %p71, %p72
    %p74 = scmp.ne.s32.totalorder %s66, %s68
    %p75 = scmp.eq.s32.totalorder %s16, 1
    %p76 = por %p74, %p75
    %p77 = scmp.ne.s32.totalorder %s68, %s69
    %p78 = scmp.eq.s32.totalorder %s16, 0
    %p79 = por %p77, %p78
    %p80 = scmp.ne.s32.totalorder %s68, %s69
    %p81 = scmp.eq.s32.totalorder %s17, 1
    %p82 = por %p80, %p81
    %p84 = scmp.ne.s32.totalorder %s69, %s83
    %p85 = scmp.eq.s32.totalorder %s17, 0
    %p86 = por %p84, %p85
    %s88 = sadd.s32 %s87, 1
    %p91 = scmp.eq.s32.totalorder %s11, 1
    %p92 = scmp.ne.s32.totalorder %s87, %s89
    %p93 = scmp.eq.s32.totalorder %s11, 0
    %p94 = por %p92, %p93
    %p95 = scmp.ne.s32.totalorder %s87, %s89
    %p96 = scmp.eq.s32.totalorder %s16, 1
    %p97 = por %p95, %p96
    %p98 = scmp.ne.s32.totalorder %s89, %s90
    %p99 = scmp.eq.s32.totalorder %s16, 0
    %p100 = por %p98, %p99
    %p101 = scmp.ne.s32.totalorder %s89, %s90
    %p102 = scmp.eq.s32.totalorder %s17, 1
    %p103 = por %p101, %p102
    %p105 = scmp.ne.s32.totalorder %s90, %s104
    %p106 = scmp.eq.s32.totalorder %s17, 0
    %p107 = por %p105, %p106
    %s109 = sadd.s32 %s108, 1
    %p112 = scmp.eq.s32.totalorder %s11, 1
    %p113 = scmp.ne.s32.totalorder %s108, %s110
    %p114 = scmp.eq.s32.totalorder %s11, 0
    %p115 = por %p113, %p114
    %p116 = scmp.ne.s32.totalorder %s108, %s110
    %p117 = scmp.eq.s32.totalorder %s16, 1
    %p118 = por %p116, %p117
    %p119 = scmp.ne.s32.totalorder %s110, %s111
    %p120 = scmp.eq.s32.totalorder %s16, 0
    %p121 = por %p119, %p120
    %p122 = scmp.ne.s32.totalorder %s110, %s111
    %p123 = scmp.eq.s32.totalorder %s17, 1
    %p124 = por %p122, %p123
    %p126 = scmp.ne.s32.totalorder %s111, %s125
    %p127 = scmp.eq.s32.totalorder %s17, 0
    %p128 = por %p126, %p127
    %s129 = ssub.s32 %s11, %s18
    %p130 = scmp.eq.s32.totalorder %s129, 0
    %s132 = sadd.s32 %s131, 1
    %s133 = scalar_select %p130, %s131, %s132
    %p136 = pneg %p130
    %p137 = scmp.eq.s32.totalorder %s11, 1
    %p138 = por %p136, %p137
    %p139 = scmp.ne.s32.totalorder %s131, %s134
    %p140 = scmp.eq.s32.totalorder %s11, 0
    %p141 = por %p139, %p140
    %p142 = scmp.ne.s32.totalorder %s131, %s134
    %p143 = scmp.eq.s32.totalorder %s16, 1
    %p144 = por %p142, %p143
    %p145 = scmp.ne.s32.totalorder %s134, %s135
    %p146 = scmp.eq.s32.totalorder %s16, 0
    %p147 = por %p145, %p146
    %p148 = scmp.ne.s32.totalorder %s134, %s135
    %p149 = scmp.eq.s32.totalorder %s17, 1
    %p150 = por %p148, %p149
    %p152 = scmp.ne.s32.totalorder %s135, %s151
    %p153 = scmp.eq.s32.totalorder %s17, 0
    %p154 = por %p152, %p153
    %p155 = scmp.le.s32.totalorder 1, %s11
    %p156 = scmp.lt.s32.totalorder %s11, 3
    %p157 = pnand %p155, %p156
    %p158 = pneg %p157
    // Predicated region
    $region9: #{decoder_block.26} parent=5 // pred_check
      _
    $region10: #{decoder_block.26} parent=5 // pred_check_branch
      %160 = sbr.rel (%p157) target = $region12
    $region11: #{decoder_block.26} parent=5 // pred_region
      %s161 = ssub.s32 %s11, 1
      // Predicated region
      $region13: #{decoder_block.26} parent=11 // pred_check
        %p162 = pneg %p58
      $region14: #{decoder_block.26} parent=11 // pred_check_branch
        %164 = sbr.rel (%p162) target = $region16
      $region15: #{decoder_block.26} parent=11 // pred_region
        _
      $region16: #{decoder_block.26} parent=11 // pred_fallthru
        _
      // Predicated region
      $region17: #{decoder_block.26} parent=11 // pred_check
        %p165 = pneg %p79
      $region18: #{decoder_block.26} parent=11 // pred_check_branch
        %167 = sbr.rel (%p165) target = $region20
      $region19: #{decoder_block.26} parent=11 // pred_region
        _
      $region20: #{decoder_block.26} parent=11 // pred_fallthru
        _
      // Predicated region
      $region21: #{decoder_block.26} parent=11 // pred_check
        %p168 = pneg %p100
      $region22: #{decoder_block.26} parent=11 // pred_check_branch
        %170 = sbr.rel (%p168) target = $region24
      $region23: #{decoder_block.26} parent=11 // pred_region
        _
      $region24: #{decoder_block.26} parent=11 // pred_fallthru
        _
      // Predicated region
      $region25: #{decoder_block.26} parent=11 // pred_check
        %p171 = pneg %p121
      $region26: #{decoder_block.26} parent=11 // pred_check_branch
        %173 = sbr.rel (%p171) target = $region28
      $region27: #{decoder_block.26} parent=11 // pred_region
        _
      $region28: #{decoder_block.26} parent=11 // pred_fallthru
        _
    $region12: #{decoder_block.26} parent=5 // pred_fallthru
      _
    %p174 = scmp.lt.s32.totalorder %s11, 2
    // Predicated region
    $region29: #{decoder_block.26} parent=5 // pred_check
      %p175 = pneg %p174
    $region30: #{decoder_block.26} parent=5 // pred_check_branch
      %177 = sbr.rel (%p175) target = $region32
    $region31: #{decoder_block.26} parent=5 // pred_region
      // Predicated region
      $region33: #{decoder_block.26} parent=31 // pred_check
        %p178 = pneg %p31
      $region34: #{decoder_block.26} parent=31 // pred_check_branch
        %180 = sbr.rel (%p178) target = $region36
      $region35: #{decoder_block.26} parent=31 // pred_region
        %p181 = scmp.lt.s32.totalorder %s11, 1
        %s182 = scalar_select %p181, %s11, 1
        %s183 = smul.addr %s182, 8
        %s184 = scalar_lea.vmem %s0, %s183
      $region36: #{decoder_block.26} parent=31 // pred_fallthru
        _
    $region32: #{decoder_block.26} parent=5 // pred_fallthru
      _
    %p185 = scmp.le.s32.totalorder 1, %s11
    %p186 = scmp.lt.s32.totalorder %s11, 3
    %p187 = pnand %p185, %p186
    %p188 = pneg %p187
    // Predicated region
    $region37: #{decoder_block.26} parent=5 // pred_check
      _
    $region38: #{decoder_block.26} parent=5 // pred_check_branch
      %190 = sbr.rel (%p187) target = $region40
    $region39: #{decoder_block.26} parent=5 // pred_region
      %s191 = ssub.s32 %s11, 1
      %p192 = scmp.lt.s32.totalorder %s16, 1
      %s193 = scalar_select %p192, %s16, 1
      %s194 = smul.addr %s193, 8
      %s195 = scalar_lea.vmem %s0, %s194
      %p196 = pneg %p37
      %p197 = pneg %p34
      %p198 = pneg %p58
      %p199 = pneg %p55
      %p200 = pneg %p79
      %p201 = pneg %p76
      %p202 = pneg %p100
      %p203 = pneg %p97
      %p204 = pneg %p121
      %p205 = pneg %p118
      %p206 = pneg %p147
      %p207 = pneg %p144
      %p208 = scmp.lt.s32.totalorder %s16, 1
      %s209 = scalar_select %p208, %s16, 1
      %s210 = smul.addr %s209, 8
      %s211 = scalar_lea.vmem %s5, %s210
      %p212 = scmp.lt.s32.totalorder %s16, 1
      %s213 = scalar_select %p212, %s16, 1
      %s214 = smul.addr %s213, 8
      %s215 = scalar_lea.vmem %s0, %s214
      %p216 = scmp.lt.s32.totalorder %s16, 1
      %s217 = scalar_select %p216, %s16, 1
      %s218 = smul.addr %s217, 8
      %s219 = scalar_lea.vmem %s5, %s218
      %v220 = vld [vmem:[%s215] sm:$0xff]
      %v221 = vld [vmem:[%s1] sm:$0xff]
      %v222 = vld [vmem:[%s1 + $0x8] sm:$0xff]
      %v223 = vld [vmem:[%s1 + $0x10] sm:$0xff]
      %v224 = vld [vmem:[%s1 + $0x18] sm:$0xff]
      %v225 = vld [vmem:[%s1 + $0x20] sm:$0xff]
      %v226 = vld [vmem:[%s1 + $0x28] sm:$0xff]
      %v227 = vld [vmem:[%s1 + $0x30] sm:$0xff]
      %v228 = vld [vmem:[%s1 + $0x38] sm:$0xff]
      %v229 = vld [vmem:[%s1 + $0x40] sm:$0xff]
      %v230 = vld [vmem:[%s1 + $0x48] sm:$0xff]
      %v231 = vld [vmem:[%s1 + $0x50] sm:$0xff]
      %v232 = vld [vmem:[%s1 + $0x58] sm:$0xff]
      %v233 = vld [vmem:[%s1 + $0x60] sm:$0xff]
      %v234 = vld [vmem:[%s1 + $0x68] sm:$0xff]
      %v235 = vld [vmem:[%s1 + $0x70] sm:$0xff]
      %v236 = vld [vmem:[%s1 + $0x78] sm:$0xff]
      %v237 = vld [vmem:[%s1 + $0x80] sm:$0xff]
      %v238 = vld [vmem:[%s1 + $0x88] sm:$0xff]
      %v239 = vld [vmem:[%s1 + $0x90] sm:$0xff]
      %v240 = vld [vmem:[%s1 + $0x98] sm:$0xff]
      %v241 = vld [vmem:[%s1 + $0xa0] sm:$0xff]
      %v242 = vld [vmem:[%s1 + $0xa8] sm:$0xff]
      %v243 = vld [vmem:[%s1 + $0xb0] sm:$0xff]
      %v244 = vld [vmem:[%s1 + $0xb8] sm:$0xff]
      %v245 = vld [vmem:[%s1 + $0xc0] sm:$0xff]
      %v246 = vld [vmem:[%s1 + $0xc8] sm:$0xff]
      %v247 = vld [vmem:[%s1 + $0xd0] sm:$0xff]
      %v248 = vld [vmem:[%s1 + $0xd8] sm:$0xff]
      %v249 = vld [vmem:[%s1 + $0xe0] sm:$0xff]
      %v250 = vld [vmem:[%s1 + $0xe8] sm:$0xff]
      %v251 = vld [vmem:[%s1 + $0xf0] sm:$0xff]
      %v252 = vld [vmem:[%s1 + $0xf8] sm:$0xff]
      %v253 = vld [vmem:[%s2] sm:$0x3]
      %v255 = vlaneseq
      %v256 = vshrl.u32 %v255, 7
      %v257 = vsub.s32 0, %v256
      %v258 = vrot.slane %v253, %v257
      %v259 = vlaneseq
      %v260 = vshrl.u32 %v259, 7
      %v261 = vsub.s32 1, %v260
      %v262 = vrot.slane %v253, %v261
      %265 = vmatprep.subr.mxu0 %v222
      %266 = vmatpush1.msra.mxu0 %v221
      %267 = vmatprep.subr.mxu0 %v224
      %268 = vmatpush1.msra.mxu0 %v223
      %269 = vmatprep.subr.mxu0 %v226
      %270 = vmatpush1.msra.mxu0 %v225
      %271 = vmatprep.subr.mxu0 %v228
      %272 = vmatpush1.msra.mxu0 %v227
      %273 = vmatprep.subr.mxu0 %v230
      %274 = vmatpush1.msra.mxu0 %v229
      %275 = vmatprep.subr.mxu0 %v232
      %276 = vmatpush1.msra.mxu0 %v231
      %277 = vmatprep.subr.mxu0 %v234
      %278 = vmatpush1.msra.mxu0 %v233
      %279 = vmatprep.subr.mxu0 %v236
      %280 = vmatpush1.msra.mxu0 %v235
      %281 = vmatprep.subr.mxu0 %v238
      %282 = vmatpush1.msra.mxu0 %v237
      %283 = vmatprep.subr.mxu0 %v240
      %284 = vmatpush1.msra.mxu0 %v239
      %285 = vmatprep.subr.mxu0 %v242
      %286 = vmatpush1.msra.mxu0 %v241
      %287 = vmatprep.subr.mxu0 %v244
      %288 = vmatpush1.msra.mxu0 %v243
      %289 = vmatprep.subr.mxu0 %v246
      %290 = vmatpush1.msra.mxu0 %v245
      %291 = vmatprep.subr.mxu0 %v248
      %292 = vmatpush1.msra.mxu0 %v247
      %293 = vmatprep.subr.mxu0 %v250
      %294 = vmatpush1.msra.mxu0 %v249
      %295 = vmatprep.subr.mxu0 %v252
      %296 = vmatpush1.msra.mxu0 %v251
      %297 = vmatprep.subr.mxu0 0.0
      %298 = vmatpush1.msra.mxu0 0.0
      %299 = vmatprep.subr.mxu0 0.0
      %300 = vmatpush1.msra.mxu0 0.0
      %301 = vmatprep.subr.mxu0 0.0
      %302 = vmatpush1.msra.mxu0 0.0
      %303 = vmatprep.subr.mxu0 0.0
      %304 = vmatpush1.msra.mxu0 0.0
      %305 = vmatprep.subr.mxu0 0.0
      %306 = vmatpush1.msra.mxu0 0.0
      %307 = vmatprep.subr.mxu0 0.0
      %308 = vmatpush1.msra.mxu0 0.0
      %309 = vmatprep.subr.mxu0 0.0
      %310 = vmatpush1.msra.mxu0 0.0
      %311 = vmatprep.subr.mxu0 0.0
      %312 = vmatpush1.msra.mxu0 0.0
      %313 = vmatprep.subr.mxu0 0.0
      %314 = vmatpush1.msra.mxu0 0.0
      %315 = vmatprep.subr.mxu0 0.0
      %316 = vmatpush1.msra.mxu0 0.0
      %317 = vmatprep.subr.mxu0 0.0
      %318 = vmatpush1.msra.mxu0 0.0
      %319 = vmatprep.subr.mxu0 0.0
      %320 = vmatpush1.msra.mxu0 0.0
      %321 = vmatprep.subr.mxu0 0.0
      %322 = vmatpush1.msra.mxu0 0.0
      %323 = vmatprep.subr.mxu0 0.0
      %324 = vmatpush1.msra.mxu0 0.0
      %325 = vmatprep.subr.mxu0 0.0
      %326 = vmatpush1.msra.mxu0 0.0
      %327 = vmatprep.subr.mxu0 0.0
      %328 = vmatpush1.msra.mxu0 0.0
      %329 = vmatprep.mubr.f32.mxu0 0.0
      %330 = vmatmul.mubr.f32.gmra.mrb[0].mxu0 %v220
      %v331 = vpop.f32.mrb[0].mxu0
      %v332 = vadd.f32 %v258, %v331
      %v333 = vpop.f32.mrb[0].mxu0
      %v334 = vadd.f32 %v262, %v333
      %335 = vdwg.mxu0
      %v336 = vmax.f32 %v332, 0.0
      %v337 = vmax.f32 %v334, 0.0
      %v338 = vld [vmem:[%s3] sm:$0xff]
      %v339 = vld [vmem:[%s3 + $0x8] sm:$0xff]
      %v340 = vld [vmem:[%s3 + $0x10] sm:$0xff]
      %v341 = vld [vmem:[%s3 + $0x18] sm:$0xff]
      %v342 = vld [vmem:[%s3 + $0x20] sm:$0xff]
      %v343 = vld [vmem:[%s3 + $0x28] sm:$0xff]
      %v344 = vld [vmem:[%s3 + $0x30] sm:$0xff]
      %v345 = vld [vmem:[%s3 + $0x38] sm:$0xff]
      %v346 = vld [vmem:[%s3 + $0x40] sm:$0xff]
      %v347 = vld [vmem:[%s3 + $0x48] sm:$0xff]
      %v348 = vld [vmem:[%s3 + $0x50] sm:$0xff]
      %v349 = vld [vmem:[%s3 + $0x58] sm:$0xff]
      %v350 = vld [vmem:[%s3 + $0x60] sm:$0xff]
      %v351 = vld [vmem:[%s3 + $0x68] sm:$0xff]
      %v352 = vld [vmem:[%s3 + $0x70] sm:$0xff]
      %v353 = vld [vmem:[%s3 + $0x78] sm:$0xff]
      %v354 = vld [vmem:[%s3 + $0x80] sm:$0xff]
      %v355 = vld [vmem:[%s3 + $0x88] sm:$0xff]
      %v356 = vld [vmem:[%s3 + $0x90] sm:$0xff]
      %v357 = vld [vmem:[%s3 + $0x98] sm:$0xff]
      %v358 = vld [vmem:[%s3 + $0xa0] sm:$0xff]
      %v359 = vld [vmem:[%s3 + $0xa8] sm:$0xff]
      %v360 = vld [vmem:[%s3 + $0xb0] sm:$0xff]
      %v361 = vld [vmem:[%s3 + $0xb8] sm:$0xff]
      %v362 = vld [vmem:[%s3 + $0xc0] sm:$0xff]
      %v363 = vld [vmem:[%s3 + $0xc8] sm:$0xff]
      %v364 = vld [vmem:[%s3 + $0xd0] sm:$0xff]
      %v365 = vld [vmem:[%s3 + $0xd8] sm:$0xff]
      %v366 = vld [vmem:[%s3 + $0xe0] sm:$0xff]
      %v367 = vld [vmem:[%s3 + $0xe8] sm:$0xff]
      %v368 = vld [vmem:[%s3 + $0xf0] sm:$0xff]
      %v369 = vld [vmem:[%s3 + $0xf8] sm:$0xff]
      %v370 = vld [vmem:[%s4] sm:$0x1]
      %v372 = vlaneseq
      %v373 = vshrl.u32 %v372, 7
      %v374 = vsub.s32 0, %v373
      %v375 = vrot.slane %v370, %v374
      %377 = vmatprep.subr.mxu0 0.0
      %378 = vmatpush1.msra.mxu0 %v338
      %379 = vmatprep.subr.mxu0 0.0
      %380 = vmatpush1.msra.mxu0 %v339
      %381 = vmatprep.subr.mxu0 0.0
      %382 = vmatpush1.msra.mxu0 %v340
      %383 = vmatprep.subr.mxu0 0.0
      %384 = vmatpush1.msra.mxu0 %v341
      %385 = vmatprep.subr.mxu0 0.0
      %386 = vmatpush1.msra.mxu0 %v342
      %387 = vmatprep.subr.mxu0 0.0
      %388 = vmatpush1.msra.mxu0 %v343
      %389 = vmatprep.subr.mxu0 0.0
      %390 = vmatpush1.msra.mxu0 %v344
      %391 = vmatprep.subr.mxu0 0.0
      %392 = vmatpush1.msra.mxu0 %v345
      %393 = vmatprep.subr.mxu0 0.0
      %394 = vmatpush1.msra.mxu0 %v346
      %395 = vmatprep.subr.mxu0 0.0
      %396 = vmatpush1.msra.mxu0 %v347
      %397 = vmatprep.subr.mxu0 0.0
      %398 = vmatpush1.msra.mxu0 %v348
      %399 = vmatprep.subr.mxu0 0.0
      %400 = vmatpush1.msra.mxu0 %v349
      %401 = vmatprep.subr.mxu0 0.0
      %402 = vmatpush1.msra.mxu0 %v350
      %403 = vmatprep.subr.mxu0 0.0
      %404 = vmatpush1.msra.mxu0 %v351
      %405 = vmatprep.subr.mxu0 0.0
      %406 = vmatpush1.msra.mxu0 %v352
      %407 = vmatprep.subr.mxu0 0.0
      %408 = vmatpush1.msra.mxu0 %v353
      %409 = vmatprep.subr.mxu0 0.0
      %410 = vmatpush1.msra.mxu0 %v354
      %411 = vmatprep.subr.mxu0 0.0
      %412 = vmatpush1.msra.mxu0 %v355
      %413 = vmatprep.subr.mxu0 0.0
      %414 = vmatpush1.msra.mxu0 %v356
      %415 = vmatprep.subr.mxu0 0.0
      %416 = vmatpush1.msra.mxu0 %v357
      %417 = vmatprep.subr.mxu0 0.0
      %418 = vmatpush1.msra.mxu0 %v358
      %419 = vmatprep.subr.mxu0 0.0
      %420 = vmatpush1.msra.mxu0 %v359
      %421 = vmatprep.subr.mxu0 0.0
      %422 = vmatpush1.msra.mxu0 %v360
      %423 = vmatprep.subr.mxu0 0.0
      %424 = vmatpush1.msra.mxu0 %v361
      %425 = vmatprep.subr.mxu0 0.0
      %426 = vmatpush1.msra.mxu0 %v362
      %427 = vmatprep.subr.mxu0 0.0
      %428 = vmatpush1.msra.mxu0 %v363
      %429 = vmatprep.subr.mxu0 0.0
      %430 = vmatpush1.msra.mxu0 %v364
      %431 = vmatprep.subr.mxu0 0.0
      %432 = vmatpush1.msra.mxu0 %v365
      %433 = vmatprep.subr.mxu0 0.0
      %434 = vmatpush1.msra.mxu0 %v366
      %435 = vmatprep.subr.mxu0 0.0
      %436 = vmatpush1.msra.mxu0 %v367
      %437 = vmatprep.subr.mxu0 0.0
      %438 = vmatpush1.msra.mxu0 %v368
      %439 = vmatprep.subr.mxu0 0.0
      %440 = vmatpush1.msra.mxu0 %v369
      %441 = vmatprep.mubr.f32.mxu0 %v337
      %442 = vmatmul.mubr.f32.gmra.mrb[0].mxu0 %v336
      %v443 = vpop.f32.mrb[0].mxu0
      %v444 = vadd.f32 %v375, %v443
      %v445 = vpop.f32.mrb[0].mxu0
      %446 = vdwg.mxu0
      %447 = vst [vmem:[%s219] sm:$0xff] %v444
      %p448 = scmp.lt.s32.totalorder %s16, 1
      %s449 = scalar_select %p448, %s16, 1
      %s450 = smul.addr %s449, 8
      %s451 = scalar_lea.vmem %s5, %s450
      // Predicated region
      $region41: #{decoder_block.26} parent=39 // pred_check
        %p452 = pneg %p144
      $region42: #{decoder_block.26} parent=39 // pred_check_branch
        %454 = sbr.rel (%p452) target = $region44
      $region43: #{decoder_block.26} parent=39 // pred_region
        _
      $region44: #{decoder_block.26} parent=39 // pred_fallthru
        _
    $region40: #{decoder_block.26} parent=5 // pred_fallthru
      _
    %p455 = scmp.le.s32.totalorder 2, %s11
    // Predicated region
    $region45: #{decoder_block.26} parent=5 // pred_check
      %p456 = pneg %p455
    $region46: #{decoder_block.26} parent=5 // pred_check_branch
      %458 = sbr.rel (%p456) target = $region48
    $region47: #{decoder_block.26} parent=5 // pred_region
      %s459 = ssub.s32 %s11, 2
      // Predicated region
      $region49: #{decoder_block.26} parent=47 // pred_check
        %p460 = pneg %p150
      $region50: #{decoder_block.26} parent=47 // pred_check_branch
        %462 = sbr.rel (%p460) target = $region52
      $region51: #{decoder_block.26} parent=47 // pred_region
        %p463 = scmp.lt.s32.totalorder %s17, 1
        %s464 = scalar_select %p463, %s17, 1
        %s465 = smul.addr %s464, 8
        %s466 = scalar_lea.vmem %s5, %s465
      $region52: #{decoder_block.26} parent=47 // pred_fallthru
        _
    $region48: #{decoder_block.26} parent=5 // pred_fallthru
      _
  $region6: #{decoder_block.26} parent=0 // loop_footer
    %s15 = sadd.s32 1, %s11
  $region7: #{decoder_block.26} parent=0 // loop_footer_branch
    %10 = sbr.rel target = $region3
  $region8: #{decoder_block.26} parent=0 // loop_exit
    _

</llo_original>
